<compile_context>
chip_gen: v5e
topology: v5e:2x2
jax: 0.10.0
libtpu: 0.0.40
codegen_flags: <defaults>
</compile_context>

<pallas_src>
import functools

import jax
import jax.numpy as jnp
from jax import lax
from jax.experimental import pallas as pl
from jax.experimental.pallas import tpu as pltpu
import numpy as np


def _cos_graph_rows(x_full, x_rows):
    """x_full: (C, N) f32 raw features (keys); x_rows: (C, T) f32 raw features for the
    query rows of this tile.  Returns the (T, N) row-slab of the cosine-attention
    graph (softmax over the last dim)."""
    # Column-normalize -> cosine similarities directly from one Gram matmul.
    ss_k = jnp.sum(x_full * x_full, axis=0, keepdims=True)           # (1, N)
    xk = x_full * lax.rsqrt(jnp.maximum(ss_k, 1e-12))                # (C, N)
    ss_q = jnp.sum(x_rows * x_rows, axis=0, keepdims=True)           # (1, T)
    xq = x_rows * lax.rsqrt(jnp.maximum(ss_q, 1e-12))                # (C, T)
    # cos[i, j] = <x_i, x_j> / (||x_i|| ||x_j||)  -- MXU, contract the channel axis.
    cos = lax.dot_general(xq, xk, (((0,), (0,)), ((), ())),
                          preferred_element_type=jnp.float32)        # (T, N)
    # Softmax over the last dim; cos <= 1 (+eps), so a fixed shift is numerically safe
    # and avoids two cross-lane max reductions per tile.
    e = jnp.exp(cos - 1.0)
    rs = jnp.sum(e, axis=-1, keepdims=True)                          # (T, 1)
    return e * pl.reciprocal(rs, approx=False)                       # (T, N)


def _sdcos_kernel(xs_ref, xt_ref, out_ref, *, tq):
    # xs_ref / xt_ref: (1, C, N) blocks (resident across the query-tile axis).
    t = pl.program_id(1)
    start = pl.multiple_of(t * tq, tq)

    xs = xs_ref[0].astype(jnp.float32)                               # (C, N)
    xt = xt_ref[0].astype(jnp.float32)
    xs_rows = xs_ref[0, :, pl.ds(start, tq)].astype(jnp.float32)     # (C, tq)
    xt_rows = xt_ref[0, :, pl.ds(start, tq)].astype(jnp.float32)

    a_s = _cos_graph_rows(xs, xs_rows)                               # (tq, N)
    a_t = _cos_graph_rows(xt, xt_rows)                               # (tq, N)
    d = a_s - a_t
    sq = d * d
    row = jnp.sum(sq, axis=1, keepdims=True)                         # (tq, 1) lane reduce
    tot = jnp.sum(row, axis=0, keepdims=True)                        # (1, 1)  sublane reduce
    out_ref[...] = tot.reshape(1, 1, 1, 1)


def criterion_sd_cos(preds, soft, tq=None):
    """preds, soft: NCHW arrays of identical shape.  Returns the scalar loss."""
    B, C, W, H = preds.shape
    N = W * H
    xs = preds.reshape(B, C, N)
    xt = soft.reshape(B, C, N)

    # Pick a query-row tile size: multiple of 128 dividing N, else fall back to N.
    if tq is None:
        tq = next((t for t in (512, 256, 128) if N % t == 0), N)
    if N % tq != 0 or (tq != N and tq % 128 != 0):
        tq = N
    nt = N // tq

    # Scoped VMEM sizing: resident double-buffered inputs + f32 copies + (tq, N) temps.
    in_bytes = jnp.dtype(preds.dtype).itemsize
    est = (2 * 2 * C * N * in_bytes
           + 4 * C * N * 4
           + 8 * tq * N * 4)
    vmem_limit = int(min(max(2 * est, 32 * 1024 * 1024), 64 * 1024 * 1024))

    out = pl.pallas_call(
        functools.partial(_sdcos_kernel, tq=tq),
        out_shape=jax.ShapeDtypeStruct((B, nt, 1, 1), jnp.float32),
        grid_spec=pltpu.PrefetchScalarGridSpec(
            num_scalar_prefetch=0,
            grid=(B, nt),
            in_specs=[
                pl.BlockSpec((1, C, N), lambda b, t: (b, 0, 0)),
                pl.BlockSpec((1, C, N), lambda b, t: (b, 0, 0)),
            ],
            out_specs=pl.BlockSpec((1, 1, 1, 1), lambda b, t: (b, t, 0, 0)),
        ),
        compiler_params=pltpu.CompilerParams(
            dimension_semantics=("parallel", "parallel"),
            vmem_limit_bytes=vmem_limit),
    )(xs, xt)

    # MSELoss(reduction='mean') over all B*N*N graph elements.
    return jnp.sum(out) / (B * N * N)


def _reference(preds, soft):
    """Pure-JAX reference mirroring the PyTorch forward exactly."""
    def attn(x):
        B, C, W, H = x.shape
        N = W * H
        pk = x.reshape(B, C, N)                              # proj_key
        pq = jnp.transpose(pk, (0, 2, 1))                    # proj_query
        qn = jnp.sqrt(jnp.sum(pq * pq, axis=2))              # (B, N)
        nm = qn[:, :, None] * qn[:, None, :]
        energy = jnp.einsum('bnc,bcm->bnm', pq, pk, precision='highest')
        return jax.nn.softmax(energy / (nm + 1e-6), axis=-1)
    gs = attn(preds)
    gt = attn(soft)
    return jnp.mean((gs - gt) ** 2)


if __name__ == "__main__":
    key = jax.random.PRNGKey(0)
    k1, k2 = jax.random.split(key)
    B, C, W, H = 2, 4, 16, 16
    preds = jax.random.normal(k1, (B, C, W, H), dtype=jnp.float32)
    soft = jax.random.normal(k2, (B, C, W, H), dtype=jnp.float32)

    # tq=128 -> two query-row tiles per batch element: exercises the tiled path.
    loss = criterion_sd_cos(preds, soft, tq=128)
    loss = jax.block_until_ready(loss)

    ref = jax.block_until_ready(_reference(preds, soft))
    np.testing.assert_allclose(np.asarray(loss), np.asarray(ref),
                               rtol=2e-3, atol=1e-9)

    print("KERNEL_OK")
</pallas_src>

<mosaic_0001>
module attributes {stable_mosaic.version = 11 : i64} {
  func.func @_sdcos_kernel(%arg0: i32, %arg1: i32, %arg2: memref<1x4x256xf32, #tpu.memory_space<vmem>>, %arg3: memref<1x4x256xf32, #tpu.memory_space<vmem>>, %arg4: memref<1x1x1x1xf32, #tpu.memory_space<vmem>>) attributes {dimension_semantics = [#tpu.dimension_semantics<parallel>, #tpu.dimension_semantics<parallel>], iteration_bounds = array<i64: 2, 2>, scalar_prefetch = 0 : i64, scratch_operands = 0 : i64, tpu.core_type = #tpu.core_type<tc>, window_params = [{transform_indices = @transform_0, window_bounds = array<i64: 1, 4, 256>}, {transform_indices = @transform_1, window_bounds = array<i64: 1, 4, 256>}, {transform_indices = @transform_2, window_bounds = array<i64: 1, 1, 1, 1>}]} {
    %c128_i32 = arith.constant 128 : i32
    %0 = arith.muli %arg1, %c128_i32 : i32
    %1 = tpu.assume_multiple %0, 128 : i32
    %c0 = arith.constant 0 : index
    %c0_0 = arith.constant 0 : index
    %c0_1 = arith.constant 0 : index
    %2 = vector.load %arg2[%c0, %c0_0, %c0_1] : memref<1x4x256xf32, #tpu.memory_space<vmem>>, vector<1x4x256xf32>
    %3 = vector.shape_cast %2 : vector<1x4x256xf32> to vector<4x256xf32>
    %c0_2 = arith.constant 0 : index
    %c0_3 = arith.constant 0 : index
    %c0_4 = arith.constant 0 : index
    %4 = vector.load %arg3[%c0_2, %c0_3, %c0_4] : memref<1x4x256xf32, #tpu.memory_space<vmem>>, vector<1x4x256xf32>
    %5 = vector.shape_cast %4 : vector<1x4x256xf32> to vector<4x256xf32>
    %c0_5 = arith.constant 0 : index
    %c0_6 = arith.constant 0 : index
    %6 = arith.index_cast %1 : i32 to index
    %7 = vector.load %arg2[%c0_5, %c0_6, %6] : memref<1x4x256xf32, #tpu.memory_space<vmem>>, vector<1x4x128xf32>
    %8 = vector.shape_cast %7 : vector<1x4x128xf32> to vector<4x128xf32>
    %c0_7 = arith.constant 0 : index
    %c0_8 = arith.constant 0 : index
    %9 = arith.index_cast %1 : i32 to index
    %10 = vector.load %arg3[%c0_7, %c0_8, %9] : memref<1x4x256xf32, #tpu.memory_space<vmem>>, vector<1x4x128xf32>
    %11 = vector.shape_cast %10 : vector<1x4x128xf32> to vector<4x128xf32>
    %12 = arith.mulf %3, %3 : vector<4x256xf32>
    %cst = arith.constant dense<0.000000e+00> : vector<256xf32>
    %13 = vector.multi_reduction <add>, %12, %cst [0] : vector<4x256xf32> to vector<256xf32>
    %14 = vector.shape_cast %13 : vector<256xf32> to vector<1x256xf32>
    %cst_9 = arith.constant 9.99999996E-13 : f32
    %15 = vector.broadcast %cst_9 : f32 to vector<1x256xf32>
    %16 = arith.maximumf %14, %15 : vector<1x256xf32>
    %17 = math.rsqrt %16 : vector<1x256xf32>
    %18 = vector.broadcast %17 : vector<1x256xf32> to vector<4x256xf32>
    %19 = arith.mulf %3, %18 : vector<4x256xf32>
    %20 = arith.mulf %8, %8 : vector<4x128xf32>
    %cst_10 = arith.constant dense<0.000000e+00> : vector<128xf32>
    %21 = vector.multi_reduction <add>, %20, %cst_10 [0] : vector<4x128xf32> to vector<128xf32>
    %22 = vector.shape_cast %21 : vector<128xf32> to vector<1x128xf32>
    %cst_11 = arith.constant 9.99999996E-13 : f32
    %23 = vector.broadcast %cst_11 : f32 to vector<1x128xf32>
    %24 = arith.maximumf %22, %23 : vector<1x128xf32>
    %25 = math.rsqrt %24 : vector<1x128xf32>
    %26 = vector.broadcast %25 : vector<1x128xf32> to vector<4x128xf32>
    %27 = arith.mulf %8, %26 : vector<4x128xf32>
    %cst_12 = arith.constant dense<0.000000e+00> : vector<128x256xf32>
    %28 = tpu.matmul %27, %19, %cst_12 {dimension_numbers = #tpu.dot_dimension_numbers<[0], [0], [1], [1], [0, 1, 1, 1], [], []>} : vector<4x128xf32>, vector<4x256xf32>, vector<128x256xf32> -> vector<128x256xf32>
    %cst_13 = arith.constant 1.000000e+00 : f32
    %29 = vector.broadcast %cst_13 : f32 to vector<128x256xf32>
    %30 = arith.subf %28, %29 : vector<128x256xf32>
    %31 = math.exp %30 : vector<128x256xf32>
    %cst_14 = arith.constant dense<0.000000e+00> : vector<128xf32>
    %32 = vector.multi_reduction <add>, %31, %cst_14 [1] : vector<128x256xf32> to vector<128xf32>
    %33 = vector.shape_cast %32 : vector<128xf32> to vector<128x1xf32>
    %34 = tpu.reciprocal %33 : vector<128x1xf32> -> vector<128x1xf32>
    %35 = vector.broadcast %34 : vector<128x1xf32> to vector<128x256xf32>
    %36 = arith.mulf %31, %35 : vector<128x256xf32>
    %37 = arith.mulf %5, %5 : vector<4x256xf32>
    %cst_15 = arith.constant dense<0.000000e+00> : vector<256xf32>
    %38 = vector.multi_reduction <add>, %37, %cst_15 [0] : vector<4x256xf32> to vector<256xf32>
    %39 = vector.shape_cast %38 : vector<256xf32> to vector<1x256xf32>
    %cst_16 = arith.constant 9.99999996E-13 : f32
    %40 = vector.broadcast %cst_16 : f32 to vector<1x256xf32>
    %41 = arith.maximumf %39, %40 : vector<1x256xf32>
    %42 = math.rsqrt %41 : vector<1x256xf32>
    %43 = vector.broadcast %42 : vector<1x256xf32> to vector<4x256xf32>
    %44 = arith.mulf %5, %43 : vector<4x256xf32>
    %45 = arith.mulf %11, %11 : vector<4x128xf32>
    %cst_17 = arith.constant dense<0.000000e+00> : vector<128xf32>
    %46 = vector.multi_reduction <add>, %45, %cst_17 [0] : vector<4x128xf32> to vector<128xf32>
    %47 = vector.shape_cast %46 : vector<128xf32> to vector<1x128xf32>
    %cst_18 = arith.constant 9.99999996E-13 : f32
    %48 = vector.broadcast %cst_18 : f32 to vector<1x128xf32>
    %49 = arith.maximumf %47, %48 : vector<1x128xf32>
    %50 = math.rsqrt %49 : vector<1x128xf32>
    %51 = vector.broadcast %50 : vector<1x128xf32> to vector<4x128xf32>
    %52 = arith.mulf %11, %51 : vector<4x128xf32>
    %cst_19 = arith.constant dense<0.000000e+00> : vector<128x256xf32>
    %53 = tpu.matmul %52, %44, %cst_19 {dimension_numbers = #tpu.dot_dimension_numbers<[0], [0], [1], [1], [0, 1, 1, 1], [], []>} : vector<4x128xf32>, vector<4x256xf32>, vector<128x256xf32> -> vector<128x256xf32>
    %cst_20 = arith.constant 1.000000e+00 : f32
    %54 = vector.broadcast %cst_20 : f32 to vector<128x256xf32>
    %55 = arith.subf %53, %54 : vector<128x256xf32>
    %56 = math.exp %55 : vector<128x256xf32>
    %cst_21 = arith.constant dense<0.000000e+00> : vector<128xf32>
    %57 = vector.multi_reduction <add>, %56, %cst_21 [1] : vector<128x256xf32> to vector<128xf32>
    %58 = vector.shape_cast %57 : vector<128xf32> to vector<128x1xf32>
    %59 = tpu.reciprocal %58 : vector<128x1xf32> -> vector<128x1xf32>
    %60 = vector.broadcast %59 : vector<128x1xf32> to vector<128x256xf32>
    %61 = arith.mulf %56, %60 : vector<128x256xf32>
    %62 = arith.subf %36, %61 : vector<128x256xf32>
    %63 = arith.mulf %62, %62 : vector<128x256xf32>
    %cst_22 = arith.constant dense<0.000000e+00> : vector<128xf32>
    %64 = vector.multi_reduction <add>, %63, %cst_22 [1] : vector<128x256xf32> to vector<128xf32>
    %65 = vector.shape_cast %64 : vector<128xf32> to vector<128x1xf32>
    %cst_23 = arith.constant dense<0.000000e+00> : vector<1xf32>
    %66 = vector.multi_reduction <add>, %65, %cst_23 [0] : vector<128x1xf32> to vector<1xf32>
    %67 = vector.shape_cast %66 : vector<1xf32> to vector<1x1xf32>
    %68 = vector.shape_cast %67 : vector<1x1xf32> to vector<1x1x1x1xf32>
    %c0_24 = arith.constant 0 : index
    %c0_25 = arith.constant 0 : index
    %c0_26 = arith.constant 0 : index
    %c0_27 = arith.constant 0 : index
    %69 = vector.load %arg4[%c0_24, %c0_25, %c0_26, %c0_27] : memref<1x1x1x1xf32, #tpu.memory_space<vmem>>, vector<1x1x1x1xf32>
    tpu.vector_store %arg4[%c0_24, %c0_25, %c0_26, %c0_27], %68 {strides = array<i32>} : memref<1x1x1x1xf32, #tpu.memory_space<vmem>>, vector<1x1x1x1xf32>,
    return
  }
  func.func @transform_0(%arg0: i32, %arg1: i32) -> (i32, i32, i32) {
    %c0_i32 = arith.constant 0 : i32
    %c0_i32_0 = arith.constant 0 : i32
    %c0_i32_1 = arith.constant 0 : i32
    return %arg0, %c0_i32, %c0_i32_0 : i32, i32, i32
  }
  func.func @transform_1(%arg0: i32, %arg1: i32) -> (i32, i32, i32) {
    %c0_i32 = arith.constant 0 : i32
    %c0_i32_0 = arith.constant 0 : i32
    %c0_i32_1 = arith.constant 0 : i32
    return %arg0, %c0_i32, %c0_i32_0 : i32, i32, i32
  }
  func.func @transform_2(%arg0: i32, %arg1: i32) -> (i32, i32, i32, i32) {
    %c0_i32 = arith.constant 0 : i32
    %c0_i32_0 = arith.constant 0 : i32
    %c0_i32_1 = arith.constant 0 : i32
    return %arg0, %arg1, %c0_i32, %c0_i32_0 : i32, i32, i32, i32
  }
}

</mosaic_0001>

<llo_original>
// kernel: tpu_custom_call.1
$region0: #{tpu_custom_call.1}
  #allocation0 [shape = 'u32[]', space=smem, size = 0x4, offset = 0x4, fixed_abs, tag = 'smem constant byte address 0x4 - core index']
  #allocation1 [shape = 'u32[72,128]{1,0:T(1,128)}', space=vmem, size = 0x9000, scoped, tag = 'internal scratch']
  %s0 = inlined_call_operand.hbm [shape: f32[2,4,256], index: 0, kind: input, shape index: {}]
  %s1 = inlined_call_operand.hbm [shape: f32[2,4,256], index: 1, kind: input, shape index: {}]
  %s2 = inlined_call_operand.vmem [shape: f32[2,2,1,1], index: 2, kind: output, shape index: {}]
  %s3 = sld [smem:[#allocation0]]
  $region49: #{tpu_custom_call.1} parent=0
    _
  %s5 = ssub.s32 1, %s3
  %s6 = scalar_select 0, %s5, %s3
  $region1: #{tpu_custom_call.1} parent=0
    #allocation2 [shape = 'u8[8192]{0}', space=vmem, size = 0x2000, scoped, tag = 'input window, operand 0']
    #allocation3 [shape = 's32[2]{0}', space=sflag, size = 0x8, scoped, tag = 'scoped memory for tpu_custom_call.1']
    #allocation4 [shape = 'u8[8192]{0}', space=vmem, size = 0x2000, scoped, tag = 'input window, operand 1']
    #allocation5 [shape = 's32[2]{0}', space=sflag, size = 0x8, scoped, tag = 'scoped memory for tpu_custom_call.1']
    %7 = vsyncpa [#allocation3], 0
    %s8 = scalar_lea.sflag [#allocation3], 1
    %9 = vsyncpa %s8, 0
    %10 = vsyncpa [#allocation5], 0
    %s11 = scalar_lea.sflag [#allocation5], 1
    %12 = vsyncpa %s11, 0
    loop: start=0, step=1, limit=6
    $region2: #{tpu_custom_call.1} parent=1 // loop_pre_header
      _
    $region3: #{tpu_custom_call.1} parent=1 // loop_header
      %s14 = sphi 0, %s18
      %p15 = scmp.ge.s32.totalorder %s14, 6
      %s21 = sphi 0, %s33
      %s22 = sphi 0, %s29
      %s23 = sphi 0, %s21
      %s24 = sphi 0, %s22
      %s25 = sphi 0, %s23
      %s26 = sphi 0, %s24
      %s36 = sphi 0, %s38
      %s39 = sphi 0, %s36
      %s40 = sphi 0, %s39
      %s56 = sphi 0, %s40
      %s62 = sphi 0, %s64
      %s65 = sphi 0, %s62
      %s66 = sphi 0, %s65
      %s82 = sphi 0, %s66
      %s90 = sphi 0, %s92
      %s93 = sphi 0, %s90
      %s94 = sphi 0, %s93
      %s110 = sphi 0, %s94
    $region4: #{tpu_custom_call.1} parent=1 // loop_header_branch
      %17 = sbr.rel (%p15) target = $region8
    $region5: #{tpu_custom_call.1} parent=1 // loop_body
      %s19 = ssub.s32 %s14, 1
      %s20 = ssub.s32 %s14, 2
      %s27 = sadd.s32 1, %s22
      %p28 = scmp.ge.s32.totalorder %s27, 2
      %s29 = scalar_select %p28, 0, %s27
      %s30 = sadd.s32 1, %s21
      %s31 = scalar_select %p28, %s30, %s21
      %p32 = scmp.ge.s32.totalorder %s31, 2
      %s33 = scalar_select %p32, 0, %s31
      %s34 = ssub.s32 %s21, %s33
      %p35 = scmp.eq.s32.totalorder %s34, 0
      %s37 = sadd.s32 %s36, 1
      %s38 = scalar_select %p35, %s36, %s37
      %p41 = pneg %p35
      %p42 = scmp.eq.s32.totalorder %s14, 3
      %p43 = por %p41, %p42
      %p44 = scmp.ne.s32.totalorder %s36, %s39
      %p45 = scmp.eq.s32.totalorder %s14, 0
      %p46 = por %p44, %p45
      %p47 = scmp.ne.s32.totalorder %s36, %s39
      %p48 = scmp.eq.s32.totalorder %s19, 3
      %p49 = por %p47, %p48
      %p50 = scmp.ne.s32.totalorder %s39, %s40
      %p51 = scmp.eq.s32.totalorder %s19, 0
      %p52 = por %p50, %p51
      %p53 = scmp.ne.s32.totalorder %s39, %s40
      %p54 = scmp.eq.s32.totalorder %s20, 3
      %p55 = por %p53, %p54
      %p57 = scmp.ne.s32.totalorder %s40, %s56
      %p58 = scmp.eq.s32.totalorder %s20, 0
      %p59 = por %p57, %p58
      %s60 = ssub.s32 %s21, %s33
      %p61 = scmp.eq.s32.totalorder %s60, 0
      %s63 = sadd.s32 %s62, 1
      %s64 = scalar_select %p61, %s62, %s63
      %p67 = pneg %p61
      %p68 = scmp.eq.s32.totalorder %s14, 3
      %p69 = por %p67, %p68
      %p70 = scmp.ne.s32.totalorder %s62, %s65
      %p71 = scmp.eq.s32.totalorder %s14, 0
      %p72 = por %p70, %p71
      %p73 = scmp.ne.s32.totalorder %s62, %s65
      %p74 = scmp.eq.s32.totalorder %s19, 3
      %p75 = por %p73, %p74
      %p76 = scmp.ne.s32.totalorder %s65, %s66
      %p77 = scmp.eq.s32.totalorder %s19, 0
      %p78 = por %p76, %p77
      %p79 = scmp.ne.s32.totalorder %s65, %s66
      %p80 = scmp.eq.s32.totalorder %s20, 3
      %p81 = por %p79, %p80
      %p83 = scmp.ne.s32.totalorder %s66, %s82
      %p84 = scmp.eq.s32.totalorder %s20, 0
      %p85 = por %p83, %p84
      %s86 = ssub.s32 %s21, %s33
      %s87 = ssub.s32 %s22, %s29
      %s88 = sor.u32 %s86, %s87
      %p89 = scmp.eq.s32.totalorder %s88, 0
      %s91 = sadd.s32 %s90, 1
      %s92 = scalar_select %p89, %s90, %s91
      %p95 = pneg %p89
      %p96 = scmp.eq.s32.totalorder %s14, 3
      %p97 = por %p95, %p96
      %p98 = scmp.ne.s32.totalorder %s90, %s93
      %p99 = scmp.eq.s32.totalorder %s14, 0
      %p100 = por %p98, %p99
      %p101 = scmp.ne.s32.totalorder %s90, %s93
      %p102 = scmp.eq.s32.totalorder %s19, 3
      %p103 = por %p101, %p102
      %p104 = scmp.ne.s32.totalorder %s93, %s94
      %p105 = scmp.eq.s32.totalorder %s19, 0
      %p106 = por %p104, %p105
      %p107 = scmp.ne.s32.totalorder %s93, %s94
      %p108 = scmp.eq.s32.totalorder %s20, 3
      %p109 = por %p107, %p108
      %p111 = scmp.ne.s32.totalorder %s94, %s110
      %p112 = scmp.eq.s32.totalorder %s20, 0
      %p113 = por %p111, %p112
      %p114 = scmp.le.s32.totalorder 1, %s14
      %p115 = scmp.lt.s32.totalorder %s14, 5
      %p116 = pnand %p114, %p115
      %p117 = pneg %p116
      // Predicated region
      $region9: #{tpu_custom_call.1} parent=5 // pred_check
        _
      $region10: #{tpu_custom_call.1} parent=5 // pred_check_branch
        %119 = sbr.rel (%p116) target = $region12
      $region11: #{tpu_custom_call.1} parent=5 // pred_region
        %s120 = ssub.s32 %s14, 1
      $region12: #{tpu_custom_call.1} parent=5 // pred_fallthru
        _
      %p121 = scmp.lt.s32.totalorder %s14, 4
      // Predicated region
      $region13: #{tpu_custom_call.1} parent=5 // pred_check
        %p122 = pneg %p121
      $region14: #{tpu_custom_call.1} parent=5 // pred_check_branch
        %124 = sbr.rel (%p122) target = $region16
      $region15: #{tpu_custom_call.1} parent=5 // pred_region
        // Predicated region
        $region17: #{tpu_custom_call.1} parent=15 // pred_check
          %p125 = pneg %p46
        $region18: #{tpu_custom_call.1} parent=15 // pred_check_branch
          %127 = sbr.rel (%p125) target = $region20
        $region19: #{tpu_custom_call.1} parent=15 // pred_region
          %s128 = sand.u32 %s36, 1
          %s129 = scalar_lea.sflag [#allocation3], %s128
          %s130 = sand.u32 %s36, 1
          %s131 = smul.addr %s130, 8
          %s132 = scalar_lea.vmem [#allocation2], %s131
          %134 = vsyncadd %s129, 0
          %s135 = smul.addr %s21, 2
          %s136 = smul.addr %s135, 4
          %s137 = scalar_lea.hbm %s0, %s136
          %s139 = sshll.u32 %s137, 4
          %s140 = int_to_ptr.hbm [resolvable:$true] %s139
          %s141 = sshll.u32 %s132, 4
          %s142 = int_to_ptr.vmem [resolvable:$true] %s141
          %144 = dma.hbm_to_vmem [thread:$0]  %s140, 128, %s142, %s129
        $region20: #{tpu_custom_call.1} parent=15 // pred_fallthru
          _
        // Predicated region
        $region21: #{tpu_custom_call.1} parent=15 // pred_check
          %p145 = pneg %p72
        $region22: #{tpu_custom_call.1} parent=15 // pred_check_branch
          %147 = sbr.rel (%p145) target = $region24
        $region23: #{tpu_custom_call.1} parent=15 // pred_region
          %s148 = sand.u32 %s62, 1
          %s149 = scalar_lea.sflag [#allocation5], %s148
          %s150 = sand.u32 %s62, 1
          %s151 = smul.addr %s150, 8
          %s152 = scalar_lea.vmem [#allocation4], %s151
          %154 = vsyncadd %s149, 0
          %s155 = smul.addr %s21, 2
          %s156 = smul.addr %s155, 4
          %s157 = scalar_lea.hbm %s1, %s156
          %s159 = sshll.u32 %s157, 4
          %s160 = int_to_ptr.hbm [resolvable:$true] %s159
          %s161 = sshll.u32 %s152, 4
          %s162 = int_to_ptr.vmem [resolvable:$true] %s161
          %164 = dma.hbm_to_vmem [thread:$0]  %s160, 128, %s162, %s149
        $region24: #{tpu_custom_call.1} parent=15 // pred_fallthru
          _
      $region16: #{tpu_custom_call.1} parent=5 // pred_fallthru
        _
      %p165 = scmp.le.s32.totalorder 1, %s14
      %p166 = scmp.lt.s32.totalorder %s14, 5
      %p167 = pnand %p165, %p166
      %p168 = pneg %p167
      // Predicated region
      $region25: #{tpu_custom_call.1} parent=5 // pred_check
        _
      $region26: #{tpu_custom_call.1} parent=5 // pred_check_branch
        %170 = sbr.rel (%p167) target = $region28
      $region27: #{tpu_custom_call.1} parent=5 // pred_region
        %s171 = ssub.s32 %s14, 1
        %s172 = sand.u32 %s39, 1
        %s173 = scalar_lea.sflag [#allocation3], %s172
        %s174 = sand.u32 %s39, 1
        %s175 = smul.addr %s174, 8
        %s176 = scalar_lea.vmem [#allocation2], %s175
        // Predicated region
        $region29: #{tpu_custom_call.1} parent=27 // pred_check
          %p177 = pneg %p52
        $region30: #{tpu_custom_call.1} parent=27 // pred_check_branch
          %179 = sbr.rel (%p177) target = $region32
        $region31: #{tpu_custom_call.1} parent=27 // pred_region
          %181 = dma.done %s173, 128
        $region32: #{tpu_custom_call.1} parent=27 // pred_fallthru
          _
        %s182 = sand.u32 %s65, 1
        %s183 = scalar_lea.sflag [#allocation5], %s182
        %s184 = sand.u32 %s65, 1
        %s185 = smul.addr %s184, 8
        %s186 = scalar_lea.vmem [#allocation4], %s185
        // Predicated region
        $region33: #{tpu_custom_call.1} parent=27 // pred_check
          %p187 = pneg %p78
        $region34: #{tpu_custom_call.1} parent=27 // pred_check_branch
          %189 = sbr.rel (%p187) target = $region36
        $region35: #{tpu_custom_call.1} parent=27 // pred_region
          %191 = dma.done %s183, 128
        $region36: #{tpu_custom_call.1} parent=27 // pred_fallthru
          _
        %s192 = sand.u32 %s39, 1
        %s193 = scalar_lea.sflag [#allocation3], %s192
        %s194 = sand.u32 %s39, 1
        %s195 = smul.addr %s194, 8
        %s196 = scalar_lea.vmem [#allocation2], %s195
        %p197 = pneg %p52
        %p198 = pneg %p49
        %s199 = sand.u32 %s65, 1
        %s200 = scalar_lea.sflag [#allocation5], %s199
        %s201 = sand.u32 %s65, 1
        %s202 = smul.addr %s201, 8
        %s203 = scalar_lea.vmem [#allocation4], %s202
        %p204 = pneg %p78
        %p205 = pneg %p75
        %p206 = pneg %p106
        %p207 = pneg %p103
        %p208 = scmp.lt.s32.totalorder %s23, 1
        %s209 = scalar_select %p208, %s23, 1
        %p210 = scmp.lt.s32.totalorder %s24, 1
        %s211 = scalar_select %p210, %s24, 1
        %s212 = smul.addr %s209, 2
        %s213 = sadd.s32 %s211, %s212
        %s214 = scalar_lea.vmem %s2, %s213
        %p215 = scmp.lt.s32.totalorder %s23, 1
        %s216 = scalar_select %p215, %s23, 1
        %p217 = scmp.lt.s32.totalorder %s24, 1
        %s218 = scalar_select %p217, %s24, 1
        %s219 = smul.addr %s216, 2
        %s220 = sadd.s32 %s218, %s219
        %s221 = scalar_lea.vmem %s2, %s220
        %s222 = smul.u32 %s24, 128
        %v223 = vld [vmem:[%s176] sm:$0xff]
        %v224 = vld [vmem:[%s186] sm:$0xff]
        %s225 = sshra.s32 %s222, 7
        %s226 = sand.u32 %s222, 127
        %s227 = smul.addr %s225, 4
        %s228 = scalar_lea.vmem %s176, %s227 [#allocation2]
        %v229 = vld [vmem:[%s228] sm:$0xf]
        %s230 = smul.addr %s225, 4
        %s231 = scalar_lea.vmem %s186, %s230 [#allocation4]
        %v232 = vld [vmem:[%s231] sm:$0xf]
        %v233 = vmul.f32 %v223, %v223
        %235 = vst [vmem:[#allocation1] ss:$2 sm:$0xff] %v233
        %v236 = vld.sshfl [vmem:[#allocation1] sm:$0xff pattern:$0x75316420]
        %v237 = vld.sshfl [vmem:[#allocation1 + $0x8] sm:$0xff pattern:$0x75316420]
        %vm240 = vcmask 1043456
        %v241 = vsel %vm240, %v236, 0.0
        %v242 = vrot.slane %v241, 4
        %v243 = vadd.f32 %v241, %v242
        %v244 = vrot.slane %v243, 2
        %v245 = vadd.f32 %v243, %v244
        %v246 = vrot.slane %v245, 1
        %v247 = vadd.f32 %v245, %v246
        %v248 = vsel %vm240, %v237, 0.0
        %v249 = vrot.slane %v248, 4
        %v250 = vadd.f32 %v248, %v249
        %v251 = vrot.slane %v250, 2
        %v252 = vadd.f32 %v250, %v251
        %v253 = vrot.slane %v252, 1
        %v254 = vadd.f32 %v252, %v253
        %v255 = vmax.f32 %v247, 1e-12
        %v256 = vmax.f32 %v254, 1e-12
        %v257 = vrsqrt.pop %v255
        %v258 = vmul.f32 %v257, %v255
        %v259 = vmul.f32 %v258, %v257
        %v260 = vmul.f32 0.5, %v259
        %v261 = vsub.f32 1.5, %v260
        %v262 = vmul.f32 %v257, %v261
        %vm263 = vweird.f32 %v255
        %vm264 = vweird.f32 %v257
        %vm265 = vmor %vm263, %vm264
        %v266 = vsel %vm265, %v257, %v262
        %v267 = vrsqrt.pop %v256
        %v268 = vmul.f32 %v267, %v256
        %v269 = vmul.f32 %v268, %v267
        %v270 = vmul.f32 0.5, %v269
        %v271 = vsub.f32 1.5, %v270
        %v272 = vmul.f32 %v267, %v271
        %vm273 = vweird.f32 %v256
        %vm274 = vweird.f32 %v267
        %vm275 = vmor %vm273, %vm274
        %v276 = vsel %vm275, %v267, %v272
        %v279 = vrot.slane %v276, 4
        %v280 = vsel %vm240, %v266, %v279
        %v282 = vmul.f32 %v223, %v280
        %v283 = vmul.f32 %v229, %v229
        %v284 = vsel %vm240, %v283, 0.0
        %v285 = vrot.slane %v284, 4
        %v286 = vadd.f32 %v284, %v285
        %v287 = vrot.slane %v286, 2
        %v288 = vadd.f32 %v286, %v287
        %v289 = vrot.slane %v288, 1
        %v290 = vadd.f32 %v288, %v289
        %v291 = vmax.f32 %v290, 1e-12
        %v292 = vrsqrt.pop %v291
        %v293 = vmul.f32 %v292, %v291
        %v294 = vmul.f32 %v293, %v292
        %v295 = vmul.f32 0.5, %v294
        %v296 = vsub.f32 1.5, %v295
        %v297 = vmul.f32 %v292, %v296
        %vm298 = vweird.f32 %v291
        %vm299 = vweird.f32 %v292
        %vm300 = vmor %vm298, %vm299
        %v301 = vsel %vm300, %v292, %v297
        %v302 = vmul.f32 %v229, %v301
        %303 = vxpose.xlu0.b32.start [1/16] %v302, 128
        %304 = vxpose.xlu0.b32.cont [2/16] 0.0, 128
        %305 = vxpose.xlu0.b32.cont [3/16] 0.0, 128
        %306 = vxpose.xlu0.b32.cont [4/16] 0.0, 128
        %307 = vxpose.xlu0.b32.cont [5/16] 0.0, 128
        %308 = vxpose.xlu0.b32.cont [6/16] 0.0, 128
        %309 = vxpose.xlu0.b32.cont [7/16] 0.0, 128
        %310 = vxpose.xlu0.b32.cont [8/16] 0.0, 128
        %311 = vxpose.xlu0.b32.cont [9/16] 0.0, 128
        %312 = vxpose.xlu0.b32.cont [10/16] 0.0, 128
        %313 = vxpose.xlu0.b32.cont [11/16] 0.0, 128
        %314 = vxpose.xlu0.b32.cont [12/16] 0.0, 128
        %315 = vxpose.xlu0.b32.cont [13/16] 0.0, 128
        %316 = vxpose.xlu0.b32.cont [14/16] 0.0, 128
        %317 = vxpose.xlu0.b32.cont [15/16] 0.0, 128
        %318 = vxpose.xlu0.b32.end [16/16] 0.0, 128
        %v319 = vpop.trf.xlu0
        %v320 = vpop.trf.xlu0
        %v321 = vpop.trf.xlu0
        %v322 = vpop.trf.xlu0
        %v323 = vpop.trf.xlu0
        %v324 = vpop.trf.xlu0
        %v325 = vpop.trf.xlu0
        %v326 = vpop.trf.xlu0
        %v327 = vpop.trf.xlu0
        %v328 = vpop.trf.xlu0
        %v329 = vpop.trf.xlu0
        %v330 = vpop.trf.xlu0
        %v331 = vpop.trf.xlu0
        %v332 = vpop.trf.xlu0
        %v333 = vpop.trf.xlu0
        %v334 = vpop.trf.xlu0
        %336 = vst [vmem:[#allocation1] ss:$2 sm:$0xff] %v282
        %v337 = vld.sshfl [vmem:[#allocation1] sm:$0xff pattern:$0x75316420]
        %v338 = vld.sshfl [vmem:[#allocation1 + $0x8] sm:$0xff pattern:$0x75316420]
        %vm339 = vcmask 31744
        %v341 = vsel %vm339, %v319, 0
        %v344 = vsel %vm339, %v320, 0
        %v347 = vsel %vm339, %v321, 0
        %v350 = vsel %vm339, %v322, 0
        %v353 = vsel %vm339, %v323, 0
        %v356 = vsel %vm339, %v324, 0
        %v359 = vsel %vm339, %v325, 0
        %v362 = vsel %vm339, %v326, 0
        %v365 = vsel %vm339, %v327, 0
        %v368 = vsel %vm339, %v328, 0
        %v371 = vsel %vm339, %v329, 0
        %v374 = vsel %vm339, %v330, 0
        %v377 = vsel %vm339, %v331, 0
        %v380 = vsel %vm339, %v332, 0
        %v383 = vsel %vm339, %v333, 0
        %v386 = vsel %vm339, %v334, 0
        %v388 = vsel %vm240, %v337, 0
        %v390 = vsel %vm240, %v338, 0
        %392 = vmatpush.msra.mxu0 0.0
        %393 = vmatpush.msra.mxu0 0.0
        %394 = vmatpush.msra.mxu0 0.0
        %395 = vmatpush.msra.mxu0 0.0
        %396 = vmatpush.msra.mxu0 0.0
        %397 = vmatpush.msra.mxu0 0.0
        %398 = vmatpush.msra.mxu0 0.0
        %399 = vmatpush.msra.mxu0 0.0
        %400 = vmatpush.msra.mxu0 0.0
        %401 = vmatpush.msra.mxu0 0.0
        %402 = vmatpush.msra.mxu0 0.0
        %403 = vmatpush.msra.mxu0 0.0
        %404 = vmatpush.msra.mxu0 0.0
        %405 = vmatpush.msra.mxu0 0.0
        %406 = vmatpush.msra.mxu0 0.0
        %407 = vmatpush.msra.mxu0 %v388
        %408 = vmatmul.f32.gmra.mxu0 %v341
        %v409 = vpop.f32.mrf.mxu0
        %v410 = vadd.f32 0.0, %v409
        %411 = vmatmul.f32.gmra.mxu0 %v344
        %v412 = vpop.f32.mrf.mxu0
        %v413 = vadd.f32 0.0, %v412
        %414 = vmatmul.f32.gmra.mxu0 %v347
        %v415 = vpop.f32.mrf.mxu0
        %v416 = vadd.f32 0.0, %v415
        %417 = vmatmul.f32.gmra.mxu0 %v350
        %v418 = vpop.f32.mrf.mxu0
        %v419 = vadd.f32 0.0, %v418
        %420 = vmatmul.f32.gmra.mxu0 %v353
        %v421 = vpop.f32.mrf.mxu0
        %v422 = vadd.f32 0.0, %v421
        %423 = vmatmul.f32.gmra.mxu0 %v356
        %v424 = vpop.f32.mrf.mxu0
        %v425 = vadd.f32 0.0, %v424
        %426 = vmatmul.f32.gmra.mxu0 %v359
        %v427 = vpop.f32.mrf.mxu0
        %v428 = vadd.f32 0.0, %v427
        %429 = vmatmul.f32.gmra.mxu0 %v362
        %v430 = vpop.f32.mrf.mxu0
        %v431 = vadd.f32 0.0, %v430
        %432 = vmatmul.f32.gmra.mxu0 %v365
        %v433 = vpop.f32.mrf.mxu0
        %v434 = vadd.f32 0.0, %v433
        %435 = vmatmul.f32.gmra.mxu0 %v368
        %v436 = vpop.f32.mrf.mxu0
        %v437 = vadd.f32 0.0, %v436
        %438 = vmatmul.f32.gmra.mxu0 %v371
        %v439 = vpop.f32.mrf.mxu0
        %v440 = vadd.f32 0.0, %v439
        %441 = vmatmul.f32.gmra.mxu0 %v374
        %v442 = vpop.f32.mrf.mxu0
        %v443 = vadd.f32 0.0, %v442
        %444 = vmatmul.f32.gmra.mxu0 %v377
        %v445 = vpop.f32.mrf.mxu0
        %v446 = vadd.f32 0.0, %v445
        %447 = vmatmul.f32.gmra.mxu0 %v380
        %v448 = vpop.f32.mrf.mxu0
        %v449 = vadd.f32 0.0, %v448
        %450 = vmatmul.f32.gmra.mxu0 %v383
        %v451 = vpop.f32.mrf.mxu0
        %v452 = vadd.f32 0.0, %v451
        %453 = vmatmul.f32.gmra.mxu0 %v386
        %v454 = vpop.f32.mrf.mxu0
        %v455 = vadd.f32 0.0, %v454
        %456 = vdwg.mxu0
        %457 = vmatpush.msra.mxu0 0.0
        %458 = vmatpush.msra.mxu0 0.0
        %459 = vmatpush.msra.mxu0 0.0
        %460 = vmatpush.msra.mxu0 0.0
        %461 = vmatpush.msra.mxu0 0.0
        %462 = vmatpush.msra.mxu0 0.0
        %463 = vmatpush.msra.mxu0 0.0
        %464 = vmatpush.msra.mxu0 0.0
        %465 = vmatpush.msra.mxu0 0.0
        %466 = vmatpush.msra.mxu0 0.0
        %467 = vmatpush.msra.mxu0 0.0
        %468 = vmatpush.msra.mxu0 0.0
        %469 = vmatpush.msra.mxu0 0.0
        %470 = vmatpush.msra.mxu0 0.0
        %471 = vmatpush.msra.mxu0 0.0
        %472 = vmatpush.msra.mxu0 %v390
        %473 = vmatmul.f32.gmra.mxu0 %v341
        %v474 = vpop.f32.mrf.mxu0
        %v475 = vadd.f32 0.0, %v474
        %476 = vmatmul.f32.gmra.mxu0 %v344
        %v477 = vpop.f32.mrf.mxu0
        %v478 = vadd.f32 0.0, %v477
        %479 = vmatmul.f32.gmra.mxu0 %v347
        %v480 = vpop.f32.mrf.mxu0
        %v481 = vadd.f32 0.0, %v480
        %482 = vmatmul.f32.gmra.mxu0 %v350
        %v483 = vpop.f32.mrf.mxu0
        %v484 = vadd.f32 0.0, %v483
        %485 = vmatmul.f32.gmra.mxu0 %v353
        %v486 = vpop.f32.mrf.mxu0
        %v487 = vadd.f32 0.0, %v486
        %488 = vmatmul.f32.gmra.mxu0 %v356
        %v489 = vpop.f32.mrf.mxu0
        %v490 = vadd.f32 0.0, %v489
        %491 = vmatmul.f32.gmra.mxu0 %v359
        %v492 = vpop.f32.mrf.mxu0
        %v493 = vadd.f32 0.0, %v492
        %494 = vmatmul.f32.gmra.mxu0 %v362
        %v495 = vpop.f32.mrf.mxu0
        %v496 = vadd.f32 0.0, %v495
        %497 = vmatmul.f32.gmra.mxu0 %v365
        %v498 = vpop.f32.mrf.mxu0
        %v499 = vadd.f32 0.0, %v498
        %500 = vmatmul.f32.gmra.mxu0 %v368
        %v501 = vpop.f32.mrf.mxu0
        %v502 = vadd.f32 0.0, %v501
        %503 = vmatmul.f32.gmra.mxu0 %v371
        %v504 = vpop.f32.mrf.mxu0
        %v505 = vadd.f32 0.0, %v504
        %506 = vmatmul.f32.gmra.mxu0 %v374
        %v507 = vpop.f32.mrf.mxu0
        %v508 = vadd.f32 0.0, %v507
        %509 = vmatmul.f32.gmra.mxu0 %v377
        %v510 = vpop.f32.mrf.mxu0
        %v511 = vadd.f32 0.0, %v510
        %512 = vmatmul.f32.gmra.mxu0 %v380
        %v513 = vpop.f32.mrf.mxu0
        %v514 = vadd.f32 0.0, %v513
        %515 = vmatmul.f32.gmra.mxu0 %v383
        %v516 = vpop.f32.mrf.mxu0
        %v517 = vadd.f32 0.0, %v516
        %518 = vmatmul.f32.gmra.mxu0 %v386
        %v519 = vpop.f32.mrf.mxu0
        %v520 = vadd.f32 0.0, %v519
        %521 = vdwg.mxu0
        %v522 = vsub.f32 %v410, 1.0
        %v523 = vsub.f32 %v475, 1.0
        %v524 = vsub.f32 %v413, 1.0
        %v525 = vsub.f32 %v478, 1.0
        %v526 = vsub.f32 %v416, 1.0
        %v527 = vsub.f32 %v481, 1.0
        %v528 = vsub.f32 %v419, 1.0
        %v529 = vsub.f32 %v484, 1.0
        %v530 = vsub.f32 %v422, 1.0
        %v531 = vsub.f32 %v487, 1.0
        %v532 = vsub.f32 %v425, 1.0
        %v533 = vsub.f32 %v490, 1.0
        %v534 = vsub.f32 %v428, 1.0
        %v535 = vsub.f32 %v493, 1.0
        %v536 = vsub.f32 %v431, 1.0
        %v537 = vsub.f32 %v496, 1.0
        %v538 = vsub.f32 %v434, 1.0
        %v539 = vsub.f32 %v499, 1.0
        %v540 = vsub.f32 %v437, 1.0
        %v541 = vsub.f32 %v502, 1.0
        %v542 = vsub.f32 %v440, 1.0
        %v543 = vsub.f32 %v505, 1.0
        %v544 = vsub.f32 %v443, 1.0
        %v545 = vsub.f32 %v508, 1.0
        %v546 = vsub.f32 %v446, 1.0
        %v547 = vsub.f32 %v511, 1.0
        %v548 = vsub.f32 %v449, 1.0
        %v549 = vsub.f32 %v514, 1.0
        %v550 = vsub.f32 %v452, 1.0
        %v551 = vsub.f32 %v517, 1.0
        %v552 = vsub.f32 %v455, 1.0
        %v553 = vsub.f32 %v520, 1.0
        %v554 = vmul.f32 %v522, 1.442695
        %v555 = vpow.pop %v554
        %v556 = vmul.f32 %v523, 1.442695
        %v557 = vpow.pop %v556
        %v558 = vmul.f32 %v524, 1.442695
        %v559 = vpow.pop %v558
        %v560 = vmul.f32 %v525, 1.442695
        %v561 = vpow.pop %v560
        %v562 = vmul.f32 %v526, 1.442695
        %v563 = vpow.pop %v562
        %v564 = vmul.f32 %v527, 1.442695
        %v565 = vpow.pop %v564
        %v566 = vmul.f32 %v528, 1.442695
        %v567 = vpow.pop %v566
        %v568 = vmul.f32 %v529, 1.442695
        %v569 = vpow.pop %v568
        %v570 = vmul.f32 %v530, 1.442695
        %v571 = vpow.pop %v570
        %v572 = vmul.f32 %v531, 1.442695
        %v573 = vpow.pop %v572
        %v574 = vmul.f32 %v532, 1.442695
        %v575 = vpow.pop %v574
        %v576 = vmul.f32 %v533, 1.442695
        %v577 = vpow.pop %v576
        %v578 = vmul.f32 %v534, 1.442695
        %v579 = vpow.pop %v578
        %v580 = vmul.f32 %v535, 1.442695
        %v581 = vpow.pop %v580
        %v582 = vmul.f32 %v536, 1.442695
        %v583 = vpow.pop %v582
        %v584 = vmul.f32 %v537, 1.442695
        %v585 = vpow.pop %v584
        %v586 = vmul.f32 %v538, 1.442695
        %v587 = vpow.pop %v586
        %v588 = vmul.f32 %v539, 1.442695
        %v589 = vpow.pop %v588
        %v590 = vmul.f32 %v540, 1.442695
        %v591 = vpow.pop %v590
        %v592 = vmul.f32 %v541, 1.442695
        %v593 = vpow.pop %v592
        %v594 = vmul.f32 %v542, 1.442695
        %v595 = vpow.pop %v594
        %v596 = vmul.f32 %v543, 1.442695
        %v597 = vpow.pop %v596
        %v598 = vmul.f32 %v544, 1.442695
        %v599 = vpow.pop %v598
        %v600 = vmul.f32 %v545, 1.442695
        %v601 = vpow.pop %v600
        %v602 = vmul.f32 %v546, 1.442695
        %v603 = vpow.pop %v602
        %v604 = vmul.f32 %v547, 1.442695
        %v605 = vpow.pop %v604
        %v606 = vmul.f32 %v548, 1.442695
        %v607 = vpow.pop %v606
        %v608 = vmul.f32 %v549, 1.442695
        %v609 = vpow.pop %v608
        %v610 = vmul.f32 %v550, 1.442695
        %v611 = vpow.pop %v610
        %v612 = vmul.f32 %v551, 1.442695
        %v613 = vpow.pop %v612
        %v614 = vmul.f32 %v552, 1.442695
        %v615 = vpow.pop %v614
        %v616 = vmul.f32 %v553, 1.442695
        %v617 = vpow.pop %v616
        %v618 = vadd.f32 %v555, %v557
        %619 = vadd.xlane.f32.xlu0 %v618
        %v620 = vpop.xlane.xlu0 %619
        %v621 = vadd.f32 %v559, %v561
        %622 = vadd.xlane.f32.xlu0 %v621
        %v623 = vpop.xlane.xlu0 %622
        %v624 = vadd.f32 %v563, %v565
        %625 = vadd.xlane.f32.xlu0 %v624
        %v626 = vpop.xlane.xlu0 %625
        %v627 = vadd.f32 %v567, %v569
        %628 = vadd.xlane.f32.xlu0 %v627
        %v629 = vpop.xlane.xlu0 %628
        %v630 = vadd.f32 %v571, %v573
        %631 = vadd.xlane.f32.xlu0 %v630
        %v632 = vpop.xlane.xlu0 %631
        %v633 = vadd.f32 %v575, %v577
        %634 = vadd.xlane.f32.xlu0 %v633
        %v635 = vpop.xlane.xlu0 %634
        %v636 = vadd.f32 %v579, %v581
        %637 = vadd.xlane.f32.xlu0 %v636
        %v638 = vpop.xlane.xlu0 %637
        %v639 = vadd.f32 %v583, %v585
        %640 = vadd.xlane.f32.xlu0 %v639
        %v641 = vpop.xlane.xlu0 %640
        %v642 = vadd.f32 %v587, %v589
        %643 = vadd.xlane.f32.xlu0 %v642
        %v644 = vpop.xlane.xlu0 %643
        %v645 = vadd.f32 %v591, %v593
        %646 = vadd.xlane.f32.xlu0 %v645
        %v647 = vpop.xlane.xlu0 %646
        %v648 = vadd.f32 %v595, %v597
        %649 = vadd.xlane.f32.xlu0 %v648
        %v650 = vpop.xlane.xlu0 %649
        %v651 = vadd.f32 %v599, %v601
        %652 = vadd.xlane.f32.xlu0 %v651
        %v653 = vpop.xlane.xlu0 %652
        %v654 = vadd.f32 %v603, %v605
        %655 = vadd.xlane.f32.xlu0 %v654
        %v656 = vpop.xlane.xlu0 %655
        %v657 = vadd.f32 %v607, %v609
        %658 = vadd.xlane.f32.xlu0 %v657
        %v659 = vpop.xlane.xlu0 %658
        %v660 = vadd.f32 %v611, %v613
        %661 = vadd.xlane.f32.xlu0 %v660
        %v662 = vpop.xlane.xlu0 %661
        %v663 = vadd.f32 %v615, %v617
        %664 = vadd.xlane.f32.xlu0 %v663
        %v665 = vpop.xlane.xlu0 %664
        %v666 = vrcp.pop %v620
        %v667 = vmul.f32 %v620, %v666
        %v668 = vsub.f32 1.0, %v667
        %v669 = vmul.f32 %v666, %v668
        %v670 = vadd.f32 %v666, %v669
        %vm671 = vweird.f32 %v620
        %vm672 = vweird.f32 %v666
        %vm673 = vmor %vm671, %vm672
        %v674 = vsel %vm673, %v666, %v670
        %v675 = vand.u32 2147483647, %v620
        %vm676 = vcmp.eq.f32.partialorder %v675, 8.507059e+37
        %v677 = vand.u32 %v620, 2147483648
        %v678 = vor.u32 1.1754944e-38, %v677
        %v679 = vsel %vm676, %v678, %v674
        %v680 = vrcp.pop %v623
        %v681 = vmul.f32 %v623, %v680
        %v682 = vsub.f32 1.0, %v681
        %v683 = vmul.f32 %v680, %v682
        %v684 = vadd.f32 %v680, %v683
        %vm685 = vweird.f32 %v623
        %vm686 = vweird.f32 %v680
        %vm687 = vmor %vm685, %vm686
        %v688 = vsel %vm687, %v680, %v684
        %v689 = vand.u32 2147483647, %v623
        %vm690 = vcmp.eq.f32.partialorder %v689, 8.507059e+37
        %v691 = vand.u32 %v623, 2147483648
        %v692 = vor.u32 1.1754944e-38, %v691
        %v693 = vsel %vm690, %v692, %v688
        %v694 = vrcp.pop %v626
        %v695 = vmul.f32 %v626, %v694
        %v696 = vsub.f32 1.0, %v695
        %v697 = vmul.f32 %v694, %v696
        %v698 = vadd.f32 %v694, %v697
        %vm699 = vweird.f32 %v626
        %vm700 = vweird.f32 %v694
        %vm701 = vmor %vm699, %vm700
        %v702 = vsel %vm701, %v694, %v698
        %v703 = vand.u32 2147483647, %v626
        %vm704 = vcmp.eq.f32.partialorder %v703, 8.507059e+37
        %v705 = vand.u32 %v626, 2147483648
        %v706 = vor.u32 1.1754944e-38, %v705
        %v707 = vsel %vm704, %v706, %v702
        %v708 = vrcp.pop %v629
        %v709 = vmul.f32 %v629, %v708
        %v710 = vsub.f32 1.0, %v709
        %v711 = vmul.f32 %v708, %v710
        %v712 = vadd.f32 %v708, %v711
        %vm713 = vweird.f32 %v629
        %vm714 = vweird.f32 %v708
        %vm715 = vmor %vm713, %vm714
        %v716 = vsel %vm715, %v708, %v712
        %v717 = vand.u32 2147483647, %v629
        %vm718 = vcmp.eq.f32.partialorder %v717, 8.507059e+37
        %v719 = vand.u32 %v629, 2147483648
        %v720 = vor.u32 1.1754944e-38, %v719
        %v721 = vsel %vm718, %v720, %v716
        %v722 = vrcp.pop %v632
        %v723 = vmul.f32 %v632, %v722
        %v724 = vsub.f32 1.0, %v723
        %v725 = vmul.f32 %v722, %v724
        %v726 = vadd.f32 %v722, %v725
        %vm727 = vweird.f32 %v632
        %vm728 = vweird.f32 %v722
        %vm729 = vmor %vm727, %vm728
        %v730 = vsel %vm729, %v722, %v726
        %v731 = vand.u32 2147483647, %v632
        %vm732 = vcmp.eq.f32.partialorder %v731, 8.507059e+37
        %v733 = vand.u32 %v632, 2147483648
        %v734 = vor.u32 1.1754944e-38, %v733
        %v735 = vsel %vm732, %v734, %v730
        %v736 = vrcp.pop %v635
        %v737 = vmul.f32 %v635, %v736
        %v738 = vsub.f32 1.0, %v737
        %v739 = vmul.f32 %v736, %v738
        %v740 = vadd.f32 %v736, %v739
        %vm741 = vweird.f32 %v635
        %vm742 = vweird.f32 %v736
        %vm743 = vmor %vm741, %vm742
        %v744 = vsel %vm743, %v736, %v740
        %v745 = vand.u32 2147483647, %v635
        %vm746 = vcmp.eq.f32.partialorder %v745, 8.507059e+37
        %v747 = vand.u32 %v635, 2147483648
        %v748 = vor.u32 1.1754944e-38, %v747
        %v749 = vsel %vm746, %v748, %v744
        %v750 = vrcp.pop %v638
        %v751 = vmul.f32 %v638, %v750
        %v752 = vsub.f32 1.0, %v751
        %v753 = vmul.f32 %v750, %v752
        %v754 = vadd.f32 %v750, %v753
        %vm755 = vweird.f32 %v638
        %vm756 = vweird.f32 %v750
        %vm757 = vmor %vm755, %vm756
        %v758 = vsel %vm757, %v750, %v754
        %v759 = vand.u32 2147483647, %v638
        %vm760 = vcmp.eq.f32.partialorder %v759, 8.507059e+37
        %v761 = vand.u32 %v638, 2147483648
        %v762 = vor.u32 1.1754944e-38, %v761
        %v763 = vsel %vm760, %v762, %v758
        %v764 = vrcp.pop %v641
        %v765 = vmul.f32 %v641, %v764
        %v766 = vsub.f32 1.0, %v765
        %v767 = vmul.f32 %v764, %v766
        %v768 = vadd.f32 %v764, %v767
        %vm769 = vweird.f32 %v641
        %vm770 = vweird.f32 %v764
        %vm771 = vmor %vm769, %vm770
        %v772 = vsel %vm771, %v764, %v768
        %v773 = vand.u32 2147483647, %v641
        %vm774 = vcmp.eq.f32.partialorder %v773, 8.507059e+37
        %v775 = vand.u32 %v641, 2147483648
        %v776 = vor.u32 1.1754944e-38, %v775
        %v777 = vsel %vm774, %v776, %v772
        %v778 = vrcp.pop %v644
        %v779 = vmul.f32 %v644, %v778
        %v780 = vsub.f32 1.0, %v779
        %v781 = vmul.f32 %v778, %v780
        %v782 = vadd.f32 %v778, %v781
        %vm783 = vweird.f32 %v644
        %vm784 = vweird.f32 %v778
        %vm785 = vmor %vm783, %vm784
        %v786 = vsel %vm785, %v778, %v782
        %v787 = vand.u32 2147483647, %v644
        %vm788 = vcmp.eq.f32.partialorder %v787, 8.507059e+37
        %v789 = vand.u32 %v644, 2147483648
        %v790 = vor.u32 1.1754944e-38, %v789
        %v791 = vsel %vm788, %v790, %v786
        %v792 = vrcp.pop %v647
        %v793 = vmul.f32 %v647, %v792
        %v794 = vsub.f32 1.0, %v793
        %v795 = vmul.f32 %v792, %v794
        %v796 = vadd.f32 %v792, %v795
        %vm797 = vweird.f32 %v647
        %vm798 = vweird.f32 %v792
        %vm799 = vmor %vm797, %vm798
        %v800 = vsel %vm799, %v792, %v796
        %v801 = vand.u32 2147483647, %v647
        %vm802 = vcmp.eq.f32.partialorder %v801, 8.507059e+37
        %v803 = vand.u32 %v647, 2147483648
        %v804 = vor.u32 1.1754944e-38, %v803
        %v805 = vsel %vm802, %v804, %v800
        %v806 = vrcp.pop %v650
        %v807 = vmul.f32 %v650, %v806
        %v808 = vsub.f32 1.0, %v807
        %v809 = vmul.f32 %v806, %v808
        %v810 = vadd.f32 %v806, %v809
        %vm811 = vweird.f32 %v650
        %vm812 = vweird.f32 %v806
        %vm813 = vmor %vm811, %vm812
        %v814 = vsel %vm813, %v806, %v810
        %v815 = vand.u32 2147483647, %v650
        %vm816 = vcmp.eq.f32.partialorder %v815, 8.507059e+37
        %v817 = vand.u32 %v650, 2147483648
        %v818 = vor.u32 1.1754944e-38, %v817
        %v819 = vsel %vm816, %v818, %v814
        %v820 = vrcp.pop %v653
        %v821 = vmul.f32 %v653, %v820
        %v822 = vsub.f32 1.0, %v821
        %v823 = vmul.f32 %v820, %v822
        %v824 = vadd.f32 %v820, %v823
        %vm825 = vweird.f32 %v653
        %vm826 = vweird.f32 %v820
        %vm827 = vmor %vm825, %vm826
        %v828 = vsel %vm827, %v820, %v824
        %v829 = vand.u32 2147483647, %v653
        %vm830 = vcmp.eq.f32.partialorder %v829, 8.507059e+37
        %v831 = vand.u32 %v653, 2147483648
        %v832 = vor.u32 1.1754944e-38, %v831
        %v833 = vsel %vm830, %v832, %v828
        %v834 = vrcp.pop %v656
        %v835 = vmul.f32 %v656, %v834
        %v836 = vsub.f32 1.0, %v835
        %v837 = vmul.f32 %v834, %v836
        %v838 = vadd.f32 %v834, %v837
        %vm839 = vweird.f32 %v656
        %vm840 = vweird.f32 %v834
        %vm841 = vmor %vm839, %vm840
        %v842 = vsel %vm841, %v834, %v838
        %v843 = vand.u32 2147483647, %v656
        %vm844 = vcmp.eq.f32.partialorder %v843, 8.507059e+37
        %v845 = vand.u32 %v656, 2147483648
        %v846 = vor.u32 1.1754944e-38, %v845
        %v847 = vsel %vm844, %v846, %v842
        %v848 = vrcp.pop %v659
        %v849 = vmul.f32 %v659, %v848
        %v850 = vsub.f32 1.0, %v849
        %v851 = vmul.f32 %v848, %v850
        %v852 = vadd.f32 %v848, %v851
        %vm853 = vweird.f32 %v659
        %vm854 = vweird.f32 %v848
        %vm855 = vmor %vm853, %vm854
        %v856 = vsel %vm855, %v848, %v852
        %v857 = vand.u32 2147483647, %v659
        %vm858 = vcmp.eq.f32.partialorder %v857, 8.507059e+37
        %v859 = vand.u32 %v659, 2147483648
        %v860 = vor.u32 1.1754944e-38, %v859
        %v861 = vsel %vm858, %v860, %v856
        %v862 = vrcp.pop %v662
        %v863 = vmul.f32 %v662, %v862
        %v864 = vsub.f32 1.0, %v863
        %v865 = vmul.f32 %v862, %v864
        %v866 = vadd.f32 %v862, %v865
        %vm867 = vweird.f32 %v662
        %vm868 = vweird.f32 %v862
        %vm869 = vmor %vm867, %vm868
        %v870 = vsel %vm869, %v862, %v866
        %v871 = vand.u32 2147483647, %v662
        %vm872 = vcmp.eq.f32.partialorder %v871, 8.507059e+37
        %v873 = vand.u32 %v662, 2147483648
        %v874 = vor.u32 1.1754944e-38, %v873
        %v875 = vsel %vm872, %v874, %v870
        %v876 = vrcp.pop %v665
        %v877 = vmul.f32 %v665, %v876
        %v878 = vsub.f32 1.0, %v877
        %v879 = vmul.f32 %v876, %v878
        %v880 = vadd.f32 %v876, %v879
        %vm881 = vweird.f32 %v665
        %vm882 = vweird.f32 %v876
        %vm883 = vmor %vm881, %vm882
        %v884 = vsel %vm883, %v876, %v880
        %v885 = vand.u32 2147483647, %v665
        %vm886 = vcmp.eq.f32.partialorder %v885, 8.507059e+37
        %v887 = vand.u32 %v665, 2147483648
        %v888 = vor.u32 1.1754944e-38, %v887
        %v889 = vsel %vm886, %v888, %v884
        %v890 = vmul.f32 %v555, %v679
        %v891 = vmul.f32 %v557, %v679
        %v892 = vmul.f32 %v559, %v693
        %v893 = vmul.f32 %v561, %v693
        %v894 = vmul.f32 %v563, %v707
        %v895 = vmul.f32 %v565, %v707
        %v896 = vmul.f32 %v567, %v721
        %v897 = vmul.f32 %v569, %v721
        %v898 = vmul.f32 %v571, %v735
        %v899 = vmul.f32 %v573, %v735
        %v900 = vmul.f32 %v575, %v749
        %v901 = vmul.f32 %v577, %v749
        %v902 = vmul.f32 %v579, %v763
        %v903 = vmul.f32 %v581, %v763
        %v904 = vmul.f32 %v583, %v777
        %v905 = vmul.f32 %v585, %v777
        %v906 = vmul.f32 %v587, %v791
        %v907 = vmul.f32 %v589, %v791
        %v908 = vmul.f32 %v591, %v805
        %v909 = vmul.f32 %v593, %v805
        %v910 = vmul.f32 %v595, %v819
        %v911 = vmul.f32 %v597, %v819
        %v912 = vmul.f32 %v599, %v833
        %v913 = vmul.f32 %v601, %v833
        %v914 = vmul.f32 %v603, %v847
        %v915 = vmul.f32 %v605, %v847
        %v916 = vmul.f32 %v607, %v861
        %v917 = vmul.f32 %v609, %v861
        %v918 = vmul.f32 %v611, %v875
        %v919 = vmul.f32 %v613, %v875
        %v920 = vmul.f32 %v615, %v889
        %v921 = vmul.f32 %v617, %v889
        %v922 = vmul.f32 %v224, %v224
        %924 = vst [vmem:[#allocation1] ss:$2 sm:$0xff] %v922
        %v925 = vld.sshfl [vmem:[#allocation1] sm:$0xff pattern:$0x75316420]
        %v926 = vld.sshfl [vmem:[#allocation1 + $0x8] sm:$0xff pattern:$0x75316420]
        %v929 = vsel %vm240, %v925, 0.0
        %v930 = vrot.slane %v929, 4
        %v931 = vadd.f32 %v929, %v930
        %v932 = vrot.slane %v931, 2
        %v933 = vadd.f32 %v931, %v932
        %v934 = vrot.slane %v933, 1
        %v935 = vadd.f32 %v933, %v934
        %v936 = vsel %vm240, %v926, 0.0
        %v937 = vrot.slane %v936, 4
        %v938 = vadd.f32 %v936, %v937
        %v939 = vrot.slane %v938, 2
        %v940 = vadd.f32 %v938, %v939
        %v941 = vrot.slane %v940, 1
        %v942 = vadd.f32 %v940, %v941
        %v943 = vmax.f32 %v935, 1e-12
        %v944 = vmax.f32 %v942, 1e-12
        %v945 = vrsqrt.pop %v943
        %v946 = vmul.f32 %v945, %v943
        %v947 = vmul.f32 %v946, %v945
        %v948 = vmul.f32 0.5, %v947
        %v949 = vsub.f32 1.5, %v948
        %v950 = vmul.f32 %v945, %v949
        %vm951 = vweird.f32 %v943
        %vm952 = vweird.f32 %v945
        %vm953 = vmor %vm951, %vm952
        %v954 = vsel %vm953, %v945, %v950
        %v955 = vrsqrt.pop %v944
        %v956 = vmul.f32 %v955, %v944
        %v957 = vmul.f32 %v956, %v955
        %v958 = vmul.f32 0.5, %v957
        %v959 = vsub.f32 1.5, %v958
        %v960 = vmul.f32 %v955, %v959
        %vm961 = vweird.f32 %v944
        %vm962 = vweird.f32 %v955
        %vm963 = vmor %vm961, %vm962
        %v964 = vsel %vm963, %v955, %v960
        %v967 = vrot.slane %v964, 4
        %v968 = vsel %vm240, %v954, %v967
        %v970 = vmul.f32 %v224, %v968
        %v971 = vmul.f32 %v232, %v232
        %v972 = vsel %vm240, %v971, 0.0
        %v973 = vrot.slane %v972, 4
        %v974 = vadd.f32 %v972, %v973
        %v975 = vrot.slane %v974, 2
        %v976 = vadd.f32 %v974, %v975
        %v977 = vrot.slane %v976, 1
        %v978 = vadd.f32 %v976, %v977
        %v979 = vmax.f32 %v978, 1e-12
        %v980 = vrsqrt.pop %v979
        %v981 = vmul.f32 %v980, %v979
        %v982 = vmul.f32 %v981, %v980
        %v983 = vmul.f32 0.5, %v982
        %v984 = vsub.f32 1.5, %v983
        %v985 = vmul.f32 %v980, %v984
        %vm986 = vweird.f32 %v979
        %vm987 = vweird.f32 %v980
        %vm988 = vmor %vm986, %vm987
        %v989 = vsel %vm988, %v980, %v985
        %v990 = vmul.f32 %v232, %v989
        %991 = vxpose.xlu0.b32.start [1/16] %v990, 128
        %992 = vxpose.xlu0.b32.cont [2/16] 0.0, 128
        %993 = vxpose.xlu0.b32.cont [3/16] 0.0, 128
        %994 = vxpose.xlu0.b32.cont [4/16] 0.0, 128
        %995 = vxpose.xlu0.b32.cont [5/16] 0.0, 128
        %996 = vxpose.xlu0.b32.cont [6/16] 0.0, 128
        %997 = vxpose.xlu0.b32.cont [7/16] 0.0, 128
        %998 = vxpose.xlu0.b32.cont [8/16] 0.0, 128
        %999 = vxpose.xlu0.b32.cont [9/16] 0.0, 128
        %1000 = vxpose.xlu0.b32.cont [10/16] 0.0, 128
        %1001 = vxpose.xlu0.b32.cont [11/16] 0.0, 128
        %1002 = vxpose.xlu0.b32.cont [12/16] 0.0, 128
        %1003 = vxpose.xlu0.b32.cont [13/16] 0.0, 128
        %1004 = vxpose.xlu0.b32.cont [14/16] 0.0, 128
        %1005 = vxpose.xlu0.b32.cont [15/16] 0.0, 128
        %1006 = vxpose.xlu0.b32.end [16/16] 0.0, 128
        %v1007 = vpop.trf.xlu0
        %v1008 = vpop.trf.xlu0
        %v1009 = vpop.trf.xlu0
        %v1010 = vpop.trf.xlu0
        %v1011 = vpop.trf.xlu0
        %v1012 = vpop.trf.xlu0
        %v1013 = vpop.trf.xlu0
        %v1014 = vpop.trf.xlu0
        %v1015 = vpop.trf.xlu0
        %v1016 = vpop.trf.xlu0
        %v1017 = vpop.trf.xlu0
        %v1018 = vpop.trf.xlu0
        %v1019 = vpop.trf.xlu0
        %v1020 = vpop.trf.xlu0
        %v1021 = vpop.trf.xlu0
        %v1022 = vpop.trf.xlu0
        %1024 = vst [vmem:[#allocation1] ss:$2 sm:$0xff] %v970
        %v1025 = vld.sshfl [vmem:[#allocation1] sm:$0xff pattern:$0x75316420]
        %v1026 = vld.sshfl [vmem:[#allocation1 + $0x8] sm:$0xff pattern:$0x75316420]
        %v1028 = vsel %vm339, %v1007, 0
        %v1031 = vsel %vm339, %v1008, 0
        %v1034 = vsel %vm339, %v1009, 0
        %v1037 = vsel %vm339, %v1010, 0
        %v1040 = vsel %vm339, %v1011, 0
        %v1043 = vsel %vm339, %v1012, 0
        %v1046 = vsel %vm339, %v1013, 0
        %v1049 = vsel %vm339, %v1014, 0
        %v1052 = vsel %vm339, %v1015, 0
        %v1055 = vsel %vm339, %v1016, 0
        %v1058 = vsel %vm339, %v1017, 0
        %v1061 = vsel %vm339, %v1018, 0
        %v1064 = vsel %vm339, %v1019, 0
        %v1067 = vsel %vm339, %v1020, 0
        %v1070 = vsel %vm339, %v1021, 0
        %v1073 = vsel %vm339, %v1022, 0
        %v1075 = vsel %vm240, %v1025, 0
        %v1077 = vsel %vm240, %v1026, 0
        %1079 = vmatpush.msra.mxu0 0.0
        %1080 = vmatpush.msra.mxu0 0.0
        %1081 = vmatpush.msra.mxu0 0.0
        %1082 = vmatpush.msra.mxu0 0.0
        %1083 = vmatpush.msra.mxu0 0.0
        %1084 = vmatpush.msra.mxu0 0.0
        %1085 = vmatpush.msra.mxu0 0.0
        %1086 = vmatpush.msra.mxu0 0.0
        %1087 = vmatpush.msra.mxu0 0.0
        %1088 = vmatpush.msra.mxu0 0.0
        %1089 = vmatpush.msra.mxu0 0.0
        %1090 = vmatpush.msra.mxu0 0.0
        %1091 = vmatpush.msra.mxu0 0.0
        %1092 = vmatpush.msra.mxu0 0.0
        %1093 = vmatpush.msra.mxu0 0.0
        %1094 = vmatpush.msra.mxu0 %v1075
        %1095 = vmatmul.f32.gmra.mxu0 %v1028
        %v1096 = vpop.f32.mrf.mxu0
        %v1097 = vadd.f32 0.0, %v1096
        %1098 = vmatmul.f32.gmra.mxu0 %v1031
        %v1099 = vpop.f32.mrf.mxu0
        %v1100 = vadd.f32 0.0, %v1099
        %1101 = vmatmul.f32.gmra.mxu0 %v1034
        %v1102 = vpop.f32.mrf.mxu0
        %v1103 = vadd.f32 0.0, %v1102
        %1104 = vmatmul.f32.gmra.mxu0 %v1037
        %v1105 = vpop.f32.mrf.mxu0
        %v1106 = vadd.f32 0.0, %v1105
        %1107 = vmatmul.f32.gmra.mxu0 %v1040
        %v1108 = vpop.f32.mrf.mxu0
        %v1109 = vadd.f32 0.0, %v1108
        %1110 = vmatmul.f32.gmra.mxu0 %v1043
        %v1111 = vpop.f32.mrf.mxu0
        %v1112 = vadd.f32 0.0, %v1111
        %1113 = vmatmul.f32.gmra.mxu0 %v1046
        %v1114 = vpop.f32.mrf.mxu0
        %v1115 = vadd.f32 0.0, %v1114
        %1116 = vmatmul.f32.gmra.mxu0 %v1049
        %v1117 = vpop.f32.mrf.mxu0
        %v1118 = vadd.f32 0.0, %v1117
        %1119 = vmatmul.f32.gmra.mxu0 %v1052
        %v1120 = vpop.f32.mrf.mxu0
        %v1121 = vadd.f32 0.0, %v1120
        %1122 = vmatmul.f32.gmra.mxu0 %v1055
        %v1123 = vpop.f32.mrf.mxu0
        %v1124 = vadd.f32 0.0, %v1123
        %1125 = vmatmul.f32.gmra.mxu0 %v1058
        %v1126 = vpop.f32.mrf.mxu0
        %v1127 = vadd.f32 0.0, %v1126
        %1128 = vmatmul.f32.gmra.mxu0 %v1061
        %v1129 = vpop.f32.mrf.mxu0
        %v1130 = vadd.f32 0.0, %v1129
        %1131 = vmatmul.f32.gmra.mxu0 %v1064
        %v1132 = vpop.f32.mrf.mxu0
        %v1133 = vadd.f32 0.0, %v1132
        %1134 = vmatmul.f32.gmra.mxu0 %v1067
        %v1135 = vpop.f32.mrf.mxu0
        %v1136 = vadd.f32 0.0, %v1135
        %1137 = vmatmul.f32.gmra.mxu0 %v1070
        %v1138 = vpop.f32.mrf.mxu0
        %v1139 = vadd.f32 0.0, %v1138
        %1140 = vmatmul.f32.gmra.mxu0 %v1073
        %v1141 = vpop.f32.mrf.mxu0
        %v1142 = vadd.f32 0.0, %v1141
        %1143 = vdwg.mxu0
        %1144 = vmatpush.msra.mxu0 0.0
        %1145 = vmatpush.msra.mxu0 0.0
        %1146 = vmatpush.msra.mxu0 0.0
        %1147 = vmatpush.msra.mxu0 0.0
        %1148 = vmatpush.msra.mxu0 0.0
        %1149 = vmatpush.msra.mxu0 0.0
        %1150 = vmatpush.msra.mxu0 0.0
        %1151 = vmatpush.msra.mxu0 0.0
        %1152 = vmatpush.msra.mxu0 0.0
        %1153 = vmatpush.msra.mxu0 0.0
        %1154 = vmatpush.msra.mxu0 0.0
        %1155 = vmatpush.msra.mxu0 0.0
        %1156 = vmatpush.msra.mxu0 0.0
        %1157 = vmatpush.msra.mxu0 0.0
        %1158 = vmatpush.msra.mxu0 0.0
        %1159 = vmatpush.msra.mxu0 %v1077
        %1160 = vmatmul.f32.gmra.mxu0 %v1028
        %v1161 = vpop.f32.mrf.mxu0
        %v1162 = vadd.f32 0.0, %v1161
        %1163 = vmatmul.f32.gmra.mxu0 %v1031
        %v1164 = vpop.f32.mrf.mxu0
        %v1165 = vadd.f32 0.0, %v1164
        %1166 = vmatmul.f32.gmra.mxu0 %v1034
        %v1167 = vpop.f32.mrf.mxu0
        %v1168 = vadd.f32 0.0, %v1167
        %1169 = vmatmul.f32.gmra.mxu0 %v1037
        %v1170 = vpop.f32.mrf.mxu0
        %v1171 = vadd.f32 0.0, %v1170
        %1172 = vmatmul.f32.gmra.mxu0 %v1040
        %v1173 = vpop.f32.mrf.mxu0
        %v1174 = vadd.f32 0.0, %v1173
        %1175 = vmatmul.f32.gmra.mxu0 %v1043
        %v1176 = vpop.f32.mrf.mxu0
        %v1177 = vadd.f32 0.0, %v1176
        %1178 = vmatmul.f32.gmra.mxu0 %v1046
        %v1179 = vpop.f32.mrf.mxu0
        %v1180 = vadd.f32 0.0, %v1179
        %1181 = vmatmul.f32.gmra.mxu0 %v1049
        %v1182 = vpop.f32.mrf.mxu0
        %v1183 = vadd.f32 0.0, %v1182
        %1184 = vmatmul.f32.gmra.mxu0 %v1052
        %v1185 = vpop.f32.mrf.mxu0
        %v1186 = vadd.f32 0.0, %v1185
        %1187 = vmatmul.f32.gmra.mxu0 %v1055
        %v1188 = vpop.f32.mrf.mxu0
        %v1189 = vadd.f32 0.0, %v1188
        %1190 = vmatmul.f32.gmra.mxu0 %v1058
        %v1191 = vpop.f32.mrf.mxu0
        %v1192 = vadd.f32 0.0, %v1191
        %1193 = vmatmul.f32.gmra.mxu0 %v1061
        %v1194 = vpop.f32.mrf.mxu0
        %v1195 = vadd.f32 0.0, %v1194
        %1196 = vmatmul.f32.gmra.mxu0 %v1064
        %v1197 = vpop.f32.mrf.mxu0
        %v1198 = vadd.f32 0.0, %v1197
        %1199 = vmatmul.f32.gmra.mxu0 %v1067
        %v1200 = vpop.f32.mrf.mxu0
        %v1201 = vadd.f32 0.0, %v1200
        %1202 = vmatmul.f32.gmra.mxu0 %v1070
        %v1203 = vpop.f32.mrf.mxu0
        %v1204 = vadd.f32 0.0, %v1203
        %1205 = vmatmul.f32.gmra.mxu0 %v1073
        %v1206 = vpop.f32.mrf.mxu0
        %v1207 = vadd.f32 0.0, %v1206
        %1208 = vdwg.mxu0
        %v1209 = vsub.f32 %v1097, 1.0
        %v1210 = vsub.f32 %v1162, 1.0
        %v1211 = vsub.f32 %v1100, 1.0
        %v1212 = vsub.f32 %v1165, 1.0
        %v1213 = vsub.f32 %v1103, 1.0
        %v1214 = vsub.f32 %v1168, 1.0
        %v1215 = vsub.f32 %v1106, 1.0
        %v1216 = vsub.f32 %v1171, 1.0
        %v1217 = vsub.f32 %v1109, 1.0
        %v1218 = vsub.f32 %v1174, 1.0
        %v1219 = vsub.f32 %v1112, 1.0
        %v1220 = vsub.f32 %v1177, 1.0
        %v1221 = vsub.f32 %v1115, 1.0
        %v1222 = vsub.f32 %v1180, 1.0
        %v1223 = vsub.f32 %v1118, 1.0
        %v1224 = vsub.f32 %v1183, 1.0
        %v1225 = vsub.f32 %v1121, 1.0
        %v1226 = vsub.f32 %v1186, 1.0
        %v1227 = vsub.f32 %v1124, 1.0
        %v1228 = vsub.f32 %v1189, 1.0
        %v1229 = vsub.f32 %v1127, 1.0
        %v1230 = vsub.f32 %v1192, 1.0
        %v1231 = vsub.f32 %v1130, 1.0
        %v1232 = vsub.f32 %v1195, 1.0
        %v1233 = vsub.f32 %v1133, 1.0
        %v1234 = vsub.f32 %v1198, 1.0
        %v1235 = vsub.f32 %v1136, 1.0
        %v1236 = vsub.f32 %v1201, 1.0
        %v1237 = vsub.f32 %v1139, 1.0
        %v1238 = vsub.f32 %v1204, 1.0
        %v1239 = vsub.f32 %v1142, 1.0
        %v1240 = vsub.f32 %v1207, 1.0
        %v1241 = vmul.f32 %v1209, 1.442695
        %v1242 = vpow.pop %v1241
        %v1243 = vmul.f32 %v1210, 1.442695
        %v1244 = vpow.pop %v1243
        %v1245 = vmul.f32 %v1211, 1.442695
        %v1246 = vpow.pop %v1245
        %v1247 = vmul.f32 %v1212, 1.442695
        %v1248 = vpow.pop %v1247
        %v1249 = vmul.f32 %v1213, 1.442695
        %v1250 = vpow.pop %v1249
        %v1251 = vmul.f32 %v1214, 1.442695
        %v1252 = vpow.pop %v1251
        %v1253 = vmul.f32 %v1215, 1.442695
        %v1254 = vpow.pop %v1253
        %v1255 = vmul.f32 %v1216, 1.442695
        %v1256 = vpow.pop %v1255
        %v1257 = vmul.f32 %v1217, 1.442695
        %v1258 = vpow.pop %v1257
        %v1259 = vmul.f32 %v1218, 1.442695
        %v1260 = vpow.pop %v1259
        %v1261 = vmul.f32 %v1219, 1.442695
        %v1262 = vpow.pop %v1261
        %v1263 = vmul.f32 %v1220, 1.442695
        %v1264 = vpow.pop %v1263
        %v1265 = vmul.f32 %v1221, 1.442695
        %v1266 = vpow.pop %v1265
        %v1267 = vmul.f32 %v1222, 1.442695
        %v1268 = vpow.pop %v1267
        %v1269 = vmul.f32 %v1223, 1.442695
        %v1270 = vpow.pop %v1269
        %v1271 = vmul.f32 %v1224, 1.442695
        %v1272 = vpow.pop %v1271
        %v1273 = vmul.f32 %v1225, 1.442695
        %v1274 = vpow.pop %v1273
        %v1275 = vmul.f32 %v1226, 1.442695
        %v1276 = vpow.pop %v1275
        %v1277 = vmul.f32 %v1227, 1.442695
        %v1278 = vpow.pop %v1277
        %v1279 = vmul.f32 %v1228, 1.442695
        %v1280 = vpow.pop %v1279
        %v1281 = vmul.f32 %v1229, 1.442695
        %v1282 = vpow.pop %v1281
        %v1283 = vmul.f32 %v1230, 1.442695
        %v1284 = vpow.pop %v1283
        %v1285 = vmul.f32 %v1231, 1.442695
        %v1286 = vpow.pop %v1285
        %v1287 = vmul.f32 %v1232, 1.442695
        %v1288 = vpow.pop %v1287
        %v1289 = vmul.f32 %v1233, 1.442695
        %v1290 = vpow.pop %v1289
        %v1291 = vmul.f32 %v1234, 1.442695
        %v1292 = vpow.pop %v1291
        %v1293 = vmul.f32 %v1235, 1.442695
        %v1294 = vpow.pop %v1293
        %v1295 = vmul.f32 %v1236, 1.442695
        %v1296 = vpow.pop %v1295
        %v1297 = vmul.f32 %v1237, 1.442695
        %v1298 = vpow.pop %v1297
        %v1299 = vmul.f32 %v1238, 1.442695
        %v1300 = vpow.pop %v1299
        %v1301 = vmul.f32 %v1239, 1.442695
        %v1302 = vpow.pop %v1301
        %v1303 = vmul.f32 %v1240, 1.442695
        %v1304 = vpow.pop %v1303
        %v1305 = vadd.f32 %v1242, %v1244
        %1306 = vadd.xlane.f32.xlu0 %v1305
        %v1307 = vpop.xlane.xlu0 %1306
        %v1308 = vadd.f32 %v1246, %v1248
        %1309 = vadd.xlane.f32.xlu0 %v1308
        %v1310 = vpop.xlane.xlu0 %1309
        %v1311 = vadd.f32 %v1250, %v1252
        %1312 = vadd.xlane.f32.xlu0 %v1311
        %v1313 = vpop.xlane.xlu0 %1312
        %v1314 = vadd.f32 %v1254, %v1256
        %1315 = vadd.xlane.f32.xlu0 %v1314
        %v1316 = vpop.xlane.xlu0 %1315
        %v1317 = vadd.f32 %v1258, %v1260
        %1318 = vadd.xlane.f32.xlu0 %v1317
        %v1319 = vpop.xlane.xlu0 %1318
        %v1320 = vadd.f32 %v1262, %v1264
        %1321 = vadd.xlane.f32.xlu0 %v1320
        %v1322 = vpop.xlane.xlu0 %1321
        %v1323 = vadd.f32 %v1266, %v1268
        %1324 = vadd.xlane.f32.xlu0 %v1323
        %v1325 = vpop.xlane.xlu0 %1324
        %v1326 = vadd.f32 %v1270, %v1272
        %1327 = vadd.xlane.f32.xlu0 %v1326
        %v1328 = vpop.xlane.xlu0 %1327
        %v1329 = vadd.f32 %v1274, %v1276
        %1330 = vadd.xlane.f32.xlu0 %v1329
        %v1331 = vpop.xlane.xlu0 %1330
        %v1332 = vadd.f32 %v1278, %v1280
        %1333 = vadd.xlane.f32.xlu0 %v1332
        %v1334 = vpop.xlane.xlu0 %1333
        %v1335 = vadd.f32 %v1282, %v1284
        %1336 = vadd.xlane.f32.xlu0 %v1335
        %v1337 = vpop.xlane.xlu0 %1336
        %v1338 = vadd.f32 %v1286, %v1288
        %1339 = vadd.xlane.f32.xlu0 %v1338
        %v1340 = vpop.xlane.xlu0 %1339
        %v1341 = vadd.f32 %v1290, %v1292
        %1342 = vadd.xlane.f32.xlu0 %v1341
        %v1343 = vpop.xlane.xlu0 %1342
        %v1344 = vadd.f32 %v1294, %v1296
        %1345 = vadd.xlane.f32.xlu0 %v1344
        %v1346 = vpop.xlane.xlu0 %1345
        %v1347 = vadd.f32 %v1298, %v1300
        %1348 = vadd.xlane.f32.xlu0 %v1347
        %v1349 = vpop.xlane.xlu0 %1348
        %v1350 = vadd.f32 %v1302, %v1304
        %1351 = vadd.xlane.f32.xlu0 %v1350
        %v1352 = vpop.xlane.xlu0 %1351
        %v1353 = vrcp.pop %v1307
        %v1354 = vmul.f32 %v1307, %v1353
        %v1355 = vsub.f32 1.0, %v1354
        %v1356 = vmul.f32 %v1353, %v1355
        %v1357 = vadd.f32 %v1353, %v1356
        %vm1358 = vweird.f32 %v1307
        %vm1359 = vweird.f32 %v1353
        %vm1360 = vmor %vm1358, %vm1359
        %v1361 = vsel %vm1360, %v1353, %v1357
        %v1362 = vand.u32 2147483647, %v1307
        %vm1363 = vcmp.eq.f32.partialorder %v1362, 8.507059e+37
        %v1364 = vand.u32 %v1307, 2147483648
        %v1365 = vor.u32 1.1754944e-38, %v1364
        %v1366 = vsel %vm1363, %v1365, %v1361
        %v1367 = vrcp.pop %v1310
        %v1368 = vmul.f32 %v1310, %v1367
        %v1369 = vsub.f32 1.0, %v1368
        %v1370 = vmul.f32 %v1367, %v1369
        %v1371 = vadd.f32 %v1367, %v1370
        %vm1372 = vweird.f32 %v1310
        %vm1373 = vweird.f32 %v1367
        %vm1374 = vmor %vm1372, %vm1373
        %v1375 = vsel %vm1374, %v1367, %v1371
        %v1376 = vand.u32 2147483647, %v1310
        %vm1377 = vcmp.eq.f32.partialorder %v1376, 8.507059e+37
        %v1378 = vand.u32 %v1310, 2147483648
        %v1379 = vor.u32 1.1754944e-38, %v1378
        %v1380 = vsel %vm1377, %v1379, %v1375
        %v1381 = vrcp.pop %v1313
        %v1382 = vmul.f32 %v1313, %v1381
        %v1383 = vsub.f32 1.0, %v1382
        %v1384 = vmul.f32 %v1381, %v1383
        %v1385 = vadd.f32 %v1381, %v1384
        %vm1386 = vweird.f32 %v1313
        %vm1387 = vweird.f32 %v1381
        %vm1388 = vmor %vm1386, %vm1387
        %v1389 = vsel %vm1388, %v1381, %v1385
        %v1390 = vand.u32 2147483647, %v1313
        %vm1391 = vcmp.eq.f32.partialorder %v1390, 8.507059e+37
        %v1392 = vand.u32 %v1313, 2147483648
        %v1393 = vor.u32 1.1754944e-38, %v1392
        %v1394 = vsel %vm1391, %v1393, %v1389
        %v1395 = vrcp.pop %v1316
        %v1396 = vmul.f32 %v1316, %v1395
        %v1397 = vsub.f32 1.0, %v1396
        %v1398 = vmul.f32 %v1395, %v1397
        %v1399 = vadd.f32 %v1395, %v1398
        %vm1400 = vweird.f32 %v1316
        %vm1401 = vweird.f32 %v1395
        %vm1402 = vmor %vm1400, %vm1401
        %v1403 = vsel %vm1402, %v1395, %v1399
        %v1404 = vand.u32 2147483647, %v1316
        %vm1405 = vcmp.eq.f32.partialorder %v1404, 8.507059e+37
        %v1406 = vand.u32 %v1316, 2147483648
        %v1407 = vor.u32 1.1754944e-38, %v1406
        %v1408 = vsel %vm1405, %v1407, %v1403
        %v1409 = vrcp.pop %v1319
        %v1410 = vmul.f32 %v1319, %v1409
        %v1411 = vsub.f32 1.0, %v1410
        %v1412 = vmul.f32 %v1409, %v1411
        %v1413 = vadd.f32 %v1409, %v1412
        %vm1414 = vweird.f32 %v1319
        %vm1415 = vweird.f32 %v1409
        %vm1416 = vmor %vm1414, %vm1415
        %v1417 = vsel %vm1416, %v1409, %v1413
        %v1418 = vand.u32 2147483647, %v1319
        %vm1419 = vcmp.eq.f32.partialorder %v1418, 8.507059e+37
        %v1420 = vand.u32 %v1319, 2147483648
        %v1421 = vor.u32 1.1754944e-38, %v1420
        %v1422 = vsel %vm1419, %v1421, %v1417
        %v1423 = vrcp.pop %v1322
        %v1424 = vmul.f32 %v1322, %v1423
        %v1425 = vsub.f32 1.0, %v1424
        %v1426 = vmul.f32 %v1423, %v1425
        %v1427 = vadd.f32 %v1423, %v1426
        %vm1428 = vweird.f32 %v1322
        %vm1429 = vweird.f32 %v1423
        %vm1430 = vmor %vm1428, %vm1429
        %v1431 = vsel %vm1430, %v1423, %v1427
        %v1432 = vand.u32 2147483647, %v1322
        %vm1433 = vcmp.eq.f32.partialorder %v1432, 8.507059e+37
        %v1434 = vand.u32 %v1322, 2147483648
        %v1435 = vor.u32 1.1754944e-38, %v1434
        %v1436 = vsel %vm1433, %v1435, %v1431
        %v1437 = vrcp.pop %v1325
        %v1438 = vmul.f32 %v1325, %v1437
        %v1439 = vsub.f32 1.0, %v1438
        %v1440 = vmul.f32 %v1437, %v1439
        %v1441 = vadd.f32 %v1437, %v1440
        %vm1442 = vweird.f32 %v1325
        %vm1443 = vweird.f32 %v1437
        %vm1444 = vmor %vm1442, %vm1443
        %v1445 = vsel %vm1444, %v1437, %v1441
        %v1446 = vand.u32 2147483647, %v1325
        %vm1447 = vcmp.eq.f32.partialorder %v1446, 8.507059e+37
        %v1448 = vand.u32 %v1325, 2147483648
        %v1449 = vor.u32 1.1754944e-38, %v1448
        %v1450 = vsel %vm1447, %v1449, %v1445
        %v1451 = vrcp.pop %v1328
        %v1452 = vmul.f32 %v1328, %v1451
        %v1453 = vsub.f32 1.0, %v1452
        %v1454 = vmul.f32 %v1451, %v1453
        %v1455 = vadd.f32 %v1451, %v1454
        %vm1456 = vweird.f32 %v1328
        %vm1457 = vweird.f32 %v1451
        %vm1458 = vmor %vm1456, %vm1457
        %v1459 = vsel %vm1458, %v1451, %v1455
        %v1460 = vand.u32 2147483647, %v1328
        %vm1461 = vcmp.eq.f32.partialorder %v1460, 8.507059e+37
        %v1462 = vand.u32 %v1328, 2147483648
        %v1463 = vor.u32 1.1754944e-38, %v1462
        %v1464 = vsel %vm1461, %v1463, %v1459
        %v1465 = vrcp.pop %v1331
        %v1466 = vmul.f32 %v1331, %v1465
        %v1467 = vsub.f32 1.0, %v1466
        %v1468 = vmul.f32 %v1465, %v1467
        %v1469 = vadd.f32 %v1465, %v1468
        %vm1470 = vweird.f32 %v1331
        %vm1471 = vweird.f32 %v1465
        %vm1472 = vmor %vm1470, %vm1471
        %v1473 = vsel %vm1472, %v1465, %v1469
        %v1474 = vand.u32 2147483647, %v1331
        %vm1475 = vcmp.eq.f32.partialorder %v1474, 8.507059e+37
        %v1476 = vand.u32 %v1331, 2147483648
        %v1477 = vor.u32 1.1754944e-38, %v1476
        %v1478 = vsel %vm1475, %v1477, %v1473
        %v1479 = vrcp.pop %v1334
        %v1480 = vmul.f32 %v1334, %v1479
        %v1481 = vsub.f32 1.0, %v1480
        %v1482 = vmul.f32 %v1479, %v1481
        %v1483 = vadd.f32 %v1479, %v1482
        %vm1484 = vweird.f32 %v1334
        %vm1485 = vweird.f32 %v1479
        %vm1486 = vmor %vm1484, %vm1485
        %v1487 = vsel %vm1486, %v1479, %v1483
        %v1488 = vand.u32 2147483647, %v1334
        %vm1489 = vcmp.eq.f32.partialorder %v1488, 8.507059e+37
        %v1490 = vand.u32 %v1334, 2147483648
        %v1491 = vor.u32 1.1754944e-38, %v1490
        %v1492 = vsel %vm1489, %v1491, %v1487
        %v1493 = vrcp.pop %v1337
        %v1494 = vmul.f32 %v1337, %v1493
        %v1495 = vsub.f32 1.0, %v1494
        %v1496 = vmul.f32 %v1493, %v1495
        %v1497 = vadd.f32 %v1493, %v1496
        %vm1498 = vweird.f32 %v1337
        %vm1499 = vweird.f32 %v1493
        %vm1500 = vmor %vm1498, %vm1499
        %v1501 = vsel %vm1500, %v1493, %v1497
        %v1502 = vand.u32 2147483647, %v1337
        %vm1503 = vcmp.eq.f32.partialorder %v1502, 8.507059e+37
        %v1504 = vand.u32 %v1337, 2147483648
        %v1505 = vor.u32 1.1754944e-38, %v1504
        %v1506 = vsel %vm1503, %v1505, %v1501
        %v1507 = vrcp.pop %v1340
        %v1508 = vmul.f32 %v1340, %v1507
        %v1509 = vsub.f32 1.0, %v1508
        %v1510 = vmul.f32 %v1507, %v1509
        %v1511 = vadd.f32 %v1507, %v1510
        %vm1512 = vweird.f32 %v1340
        %vm1513 = vweird.f32 %v1507
        %vm1514 = vmor %vm1512, %vm1513
        %v1515 = vsel %vm1514, %v1507, %v1511
        %v1516 = vand.u32 2147483647, %v1340
        %vm1517 = vcmp.eq.f32.partialorder %v1516, 8.507059e+37
        %v1518 = vand.u32 %v1340, 2147483648
        %v1519 = vor.u32 1.1754944e-38, %v1518
        %v1520 = vsel %vm1517, %v1519, %v1515
        %v1521 = vrcp.pop %v1343
        %v1522 = vmul.f32 %v1343, %v1521
        %v1523 = vsub.f32 1.0, %v1522
        %v1524 = vmul.f32 %v1521, %v1523
        %v1525 = vadd.f32 %v1521, %v1524
        %vm1526 = vweird.f32 %v1343
        %vm1527 = vweird.f32 %v1521
        %vm1528 = vmor %vm1526, %vm1527
        %v1529 = vsel %vm1528, %v1521, %v1525
        %v1530 = vand.u32 2147483647, %v1343
        %vm1531 = vcmp.eq.f32.partialorder %v1530, 8.507059e+37
        %v1532 = vand.u32 %v1343, 2147483648
        %v1533 = vor.u32 1.1754944e-38, %v1532
        %v1534 = vsel %vm1531, %v1533, %v1529
        %v1535 = vrcp.pop %v1346
        %v1536 = vmul.f32 %v1346, %v1535
        %v1537 = vsub.f32 1.0, %v1536
        %v1538 = vmul.f32 %v1535, %v1537
        %v1539 = vadd.f32 %v1535, %v1538
        %vm1540 = vweird.f32 %v1346
        %vm1541 = vweird.f32 %v1535
        %vm1542 = vmor %vm1540, %vm1541
        %v1543 = vsel %vm1542, %v1535, %v1539
        %v1544 = vand.u32 2147483647, %v1346
        %vm1545 = vcmp.eq.f32.partialorder %v1544, 8.507059e+37
        %v1546 = vand.u32 %v1346, 2147483648
        %v1547 = vor.u32 1.1754944e-38, %v1546
        %v1548 = vsel %vm1545, %v1547, %v1543
        %v1549 = vrcp.pop %v1349
        %v1550 = vmul.f32 %v1349, %v1549
        %v1551 = vsub.f32 1.0, %v1550
        %v1552 = vmul.f32 %v1549, %v1551
        %v1553 = vadd.f32 %v1549, %v1552
        %vm1554 = vweird.f32 %v1349
        %vm1555 = vweird.f32 %v1549
        %vm1556 = vmor %vm1554, %vm1555
        %v1557 = vsel %vm1556, %v1549, %v1553
        %v1558 = vand.u32 2147483647, %v1349
        %vm1559 = vcmp.eq.f32.partialorder %v1558, 8.507059e+37
        %v1560 = vand.u32 %v1349, 2147483648
        %v1561 = vor.u32 1.1754944e-38, %v1560
        %v1562 = vsel %vm1559, %v1561, %v1557
        %v1563 = vrcp.pop %v1352
        %v1564 = vmul.f32 %v1352, %v1563
        %v1565 = vsub.f32 1.0, %v1564
        %v1566 = vmul.f32 %v1563, %v1565
        %v1567 = vadd.f32 %v1563, %v1566
        %vm1568 = vweird.f32 %v1352
        %vm1569 = vweird.f32 %v1563
        %vm1570 = vmor %vm1568, %vm1569
        %v1571 = vsel %vm1570, %v1563, %v1567
        %v1572 = vand.u32 2147483647, %v1352
        %vm1573 = vcmp.eq.f32.partialorder %v1572, 8.507059e+37
        %v1574 = vand.u32 %v1352, 2147483648
        %v1575 = vor.u32 1.1754944e-38, %v1574
        %v1576 = vsel %vm1573, %v1575, %v1571
        %v1577 = vmul.f32 %v1242, %v1366
        %v1578 = vmul.f32 %v1244, %v1366
        %v1579 = vmul.f32 %v1246, %v1380
        %v1580 = vmul.f32 %v1248, %v1380
        %v1581 = vmul.f32 %v1250, %v1394
        %v1582 = vmul.f32 %v1252, %v1394
        %v1583 = vmul.f32 %v1254, %v1408
        %v1584 = vmul.f32 %v1256, %v1408
        %v1585 = vmul.f32 %v1258, %v1422
        %v1586 = vmul.f32 %v1260, %v1422
        %v1587 = vmul.f32 %v1262, %v1436
        %v1588 = vmul.f32 %v1264, %v1436
        %v1589 = vmul.f32 %v1266, %v1450
        %v1590 = vmul.f32 %v1268, %v1450
        %v1591 = vmul.f32 %v1270, %v1464
        %v1592 = vmul.f32 %v1272, %v1464
        %v1593 = vmul.f32 %v1274, %v1478
        %v1594 = vmul.f32 %v1276, %v1478
        %v1595 = vmul.f32 %v1278, %v1492
        %v1596 = vmul.f32 %v1280, %v1492
        %v1597 = vmul.f32 %v1282, %v1506
        %v1598 = vmul.f32 %v1284, %v1506
        %v1599 = vmul.f32 %v1286, %v1520
        %v1600 = vmul.f32 %v1288, %v1520
        %v1601 = vmul.f32 %v1290, %v1534
        %v1602 = vmul.f32 %v1292, %v1534
        %v1603 = vmul.f32 %v1294, %v1548
        %v1604 = vmul.f32 %v1296, %v1548
        %v1605 = vmul.f32 %v1298, %v1562
        %v1606 = vmul.f32 %v1300, %v1562
        %v1607 = vmul.f32 %v1302, %v1576
        %v1608 = vmul.f32 %v1304, %v1576
        %v1609 = vsub.f32 %v890, %v1577
        %v1610 = vsub.f32 %v891, %v1578
        %v1611 = vsub.f32 %v892, %v1579
        %v1612 = vsub.f32 %v893, %v1580
        %v1613 = vsub.f32 %v894, %v1581
        %v1614 = vsub.f32 %v895, %v1582
        %v1615 = vsub.f32 %v896, %v1583
        %v1616 = vsub.f32 %v897, %v1584
        %v1617 = vsub.f32 %v898, %v1585
        %v1618 = vsub.f32 %v899, %v1586
        %v1619 = vsub.f32 %v900, %v1587
        %v1620 = vsub.f32 %v901, %v1588
        %v1621 = vsub.f32 %v902, %v1589
        %v1622 = vsub.f32 %v903, %v1590
        %v1623 = vsub.f32 %v904, %v1591
        %v1624 = vsub.f32 %v905, %v1592
        %v1625 = vsub.f32 %v906, %v1593
        %v1626 = vsub.f32 %v907, %v1594
        %v1627 = vsub.f32 %v908, %v1595
        %v1628 = vsub.f32 %v909, %v1596
        %v1629 = vsub.f32 %v910, %v1597
        %v1630 = vsub.f32 %v911, %v1598
        %v1631 = vsub.f32 %v912, %v1599
        %v1632 = vsub.f32 %v913, %v1600
        %v1633 = vsub.f32 %v914, %v1601
        %v1634 = vsub.f32 %v915, %v1602
        %v1635 = vsub.f32 %v916, %v1603
        %v1636 = vsub.f32 %v917, %v1604
        %v1637 = vsub.f32 %v918, %v1605
        %v1638 = vsub.f32 %v919, %v1606
        %v1639 = vsub.f32 %v920, %v1607
        %v1640 = vsub.f32 %v921, %v1608
        %v1641 = vmul.f32 %v1609, %v1609
        %v1642 = vmul.f32 %v1610, %v1610
        %v1643 = vmul.f32 %v1611, %v1611
        %v1644 = vmul.f32 %v1612, %v1612
        %v1645 = vmul.f32 %v1613, %v1613
        %v1646 = vmul.f32 %v1614, %v1614
        %v1647 = vmul.f32 %v1615, %v1615
        %v1648 = vmul.f32 %v1616, %v1616
        %v1649 = vmul.f32 %v1617, %v1617
        %v1650 = vmul.f32 %v1618, %v1618
        %v1651 = vmul.f32 %v1619, %v1619
        %v1652 = vmul.f32 %v1620, %v1620
        %v1653 = vmul.f32 %v1621, %v1621
        %v1654 = vmul.f32 %v1622, %v1622
        %v1655 = vmul.f32 %v1623, %v1623
        %v1656 = vmul.f32 %v1624, %v1624
        %v1657 = vmul.f32 %v1625, %v1625
        %v1658 = vmul.f32 %v1626, %v1626
        %v1659 = vmul.f32 %v1627, %v1627
        %v1660 = vmul.f32 %v1628, %v1628
        %v1661 = vmul.f32 %v1629, %v1629
        %v1662 = vmul.f32 %v1630, %v1630
        %v1663 = vmul.f32 %v1631, %v1631
        %v1664 = vmul.f32 %v1632, %v1632
        %v1665 = vmul.f32 %v1633, %v1633
        %v1666 = vmul.f32 %v1634, %v1634
        %v1667 = vmul.f32 %v1635, %v1635
        %v1668 = vmul.f32 %v1636, %v1636
        %v1669 = vmul.f32 %v1637, %v1637
        %v1670 = vmul.f32 %v1638, %v1638
        %v1671 = vmul.f32 %v1639, %v1639
        %v1672 = vmul.f32 %v1640, %v1640
        %v1673 = vadd.f32 %v1641, %v1642
        %1674 = vadd.xlane.f32.xlu0 %v1673
        %v1675 = vpop.xlane.xlu0 %1674
        %v1676 = vadd.f32 %v1643, %v1644
        %1677 = vadd.xlane.f32.xlu0 %v1676
        %v1678 = vpop.xlane.xlu0 %1677
        %v1679 = vadd.f32 %v1645, %v1646
        %1680 = vadd.xlane.f32.xlu0 %v1679
        %v1681 = vpop.xlane.xlu0 %1680
        %v1682 = vadd.f32 %v1647, %v1648
        %1683 = vadd.xlane.f32.xlu0 %v1682
        %v1684 = vpop.xlane.xlu0 %1683
        %v1685 = vadd.f32 %v1649, %v1650
        %1686 = vadd.xlane.f32.xlu0 %v1685
        %v1687 = vpop.xlane.xlu0 %1686
        %v1688 = vadd.f32 %v1651, %v1652
        %1689 = vadd.xlane.f32.xlu0 %v1688
        %v1690 = vpop.xlane.xlu0 %1689
        %v1691 = vadd.f32 %v1653, %v1654
        %1692 = vadd.xlane.f32.xlu0 %v1691
        %v1693 = vpop.xlane.xlu0 %1692
        %v1694 = vadd.f32 %v1655, %v1656
        %1695 = vadd.xlane.f32.xlu0 %v1694
        %v1696 = vpop.xlane.xlu0 %1695
        %v1697 = vadd.f32 %v1657, %v1658
        %1698 = vadd.xlane.f32.xlu0 %v1697
        %v1699 = vpop.xlane.xlu0 %1698
        %v1700 = vadd.f32 %v1659, %v1660
        %1701 = vadd.xlane.f32.xlu0 %v1700
        %v1702 = vpop.xlane.xlu0 %1701
        %v1703 = vadd.f32 %v1661, %v1662
        %1704 = vadd.xlane.f32.xlu0 %v1703
        %v1705 = vpop.xlane.xlu0 %1704
        %v1706 = vadd.f32 %v1663, %v1664
        %1707 = vadd.xlane.f32.xlu0 %v1706
        %v1708 = vpop.xlane.xlu0 %1707
        %v1709 = vadd.f32 %v1665, %v1666
        %1710 = vadd.xlane.f32.xlu0 %v1709
        %v1711 = vpop.xlane.xlu0 %1710
        %v1712 = vadd.f32 %v1667, %v1668
        %1713 = vadd.xlane.f32.xlu0 %v1712
        %v1714 = vpop.xlane.xlu0 %1713
        %v1715 = vadd.f32 %v1669, %v1670
        %1716 = vadd.xlane.f32.xlu0 %v1715
        %v1717 = vpop.xlane.xlu0 %1716
        %v1718 = vadd.f32 %v1671, %v1672
        %1719 = vadd.xlane.f32.xlu0 %v1718
        %v1720 = vpop.xlane.xlu0 %1719
        %v1721 = vadd.f32 %v1675, %v1678
        %v1722 = vadd.f32 %v1721, %v1681
        %v1723 = vadd.f32 %v1722, %v1684
        %v1724 = vadd.f32 %v1723, %v1687
        %v1725 = vadd.f32 %v1724, %v1690
        %v1726 = vadd.f32 %v1725, %v1693
        %v1727 = vadd.f32 %v1726, %v1696
        %v1728 = vadd.f32 %v1727, %v1699
        %v1729 = vadd.f32 %v1728, %v1702
        %v1730 = vadd.f32 %v1729, %v1705
        %v1731 = vadd.f32 %v1730, %v1708
        %v1732 = vadd.f32 %v1731, %v1711
        %v1733 = vadd.f32 %v1732, %v1714
        %v1734 = vadd.f32 %v1733, %v1717
        %v1735 = vadd.f32 %v1734, %v1720
        %v1736 = vrot.slane %v1735, 4
        %v1737 = vadd.f32 %v1735, %v1736
        %v1738 = vrot.slane %v1737, 2
        %v1739 = vadd.f32 %v1737, %v1738
        %v1740 = vrot.slane %v1739, 1
        %v1741 = vadd.f32 %v1739, %v1740
        %vm1742 = vcmask 0
        %1743 = vst.msk [vmem:[%s221] sm:$0x1] %vm1742, %v1741
        %p1744 = scmp.lt.s32.totalorder %s23, 1
        %s1745 = scalar_select %p1744, %s23, 1
        %p1746 = scmp.lt.s32.totalorder %s24, 1
        %s1747 = scalar_select %p1746, %s24, 1
        %s1748 = smul.addr %s1745, 2
        %s1749 = sadd.s32 %s1747, %s1748
        %s1750 = scalar_lea.vmem %s2, %s1749
        // Predicated region
        $region37: #{tpu_custom_call.1} parent=27 // pred_check
          %p1751 = pneg %p103
        $region38: #{tpu_custom_call.1} parent=27 // pred_check_branch
          %1753 = sbr.rel (%p1751) target = $region40
        $region39: #{tpu_custom_call.1} parent=27 // pred_region
          _
        $region40: #{tpu_custom_call.1} parent=27 // pred_fallthru
          _
      $region28: #{tpu_custom_call.1} parent=5 // pred_fallthru
        _
      %p1754 = scmp.le.s32.totalorder 2, %s14
      // Predicated region
      $region41: #{tpu_custom_call.1} parent=5 // pred_check
        %p1755 = pneg %p1754
      $region42: #{tpu_custom_call.1} parent=5 // pred_check_branch
        %1757 = sbr.rel (%p1755) target = $region44
      $region43: #{tpu_custom_call.1} parent=5 // pred_region
        %s1758 = ssub.s32 %s14, 2
        // Predicated region
        $region45: #{tpu_custom_call.1} parent=43 // pred_check
          %p1759 = pneg %p109
        $region46: #{tpu_custom_call.1} parent=43 // pred_check_branch
          %1761 = sbr.rel (%p1759) target = $region48
        $region47: #{tpu_custom_call.1} parent=43 // pred_region
          %p1762 = scmp.lt.s32.totalorder %s25, 1
          %s1763 = scalar_select %p1762, %s25, 1
          %p1764 = scmp.lt.s32.totalorder %s26, 1
          %s1765 = scalar_select %p1764, %s26, 1
          %s1766 = smul.addr %s1763, 2
          %s1767 = sadd.s32 %s1765, %s1766
          %s1768 = scalar_lea.vmem %s2, %s1767
        $region48: #{tpu_custom_call.1} parent=43 // pred_fallthru
          _
      $region44: #{tpu_custom_call.1} parent=5 // pred_fallthru
        _
    $region6: #{tpu_custom_call.1} parent=1 // loop_footer
      %s18 = sadd.s32 1, %s14
    $region7: #{tpu_custom_call.1} parent=1 // loop_footer_branch
      %13 = sbr.rel target = $region3
    $region8: #{tpu_custom_call.1} parent=1 // loop_exit
      _
    %1769 = vsyncpa [#allocation3], 1
    %s1770 = scalar_lea.sflag [#allocation3], 1
    %1771 = vsyncpa %s1770, 1
    %1772 = vsyncpa [#allocation5], 1
    %s1773 = scalar_lea.sflag [#allocation5], 1
    %1774 = vsyncpa %s1773, 1

</llo_original>
